<compile_context>
chip_gen: v6e
topology: v6e:2x2x1
jax: 0.10.0
libtpu: 0.0.40
codegen_flags: <defaults>
</compile_context>

<pallas_src>
import functools

import jax
import jax.numpy as jnp
from jax import lax
from jax.experimental import pallas as pl
from jax.experimental.pallas import tpu as pltpu


def _round_up(x, m):
    return (x + m - 1) // m * m


# ----------------------------------------------------------------------------
# Generation-aware hardware knobs (trace-time queries with safe fallbacks)
# ----------------------------------------------------------------------------
@functools.lru_cache(maxsize=None)
def _vmem_limit_bytes():
    cap = 64 * 1024 * 1024
    try:
        q = int(pltpu.get_tpu_info().vmem_capacity_bytes)
        if q > 0:
            cap = q
    except Exception:
        pass
    # ~3/4 of per-core VMEM: ~96 MiB on v5e/v6e (128 MiB), 48 MiB on v7x (64 MiB).
    return min((cap // 4) * 3, 100 * 1024 * 1024)


@functools.lru_cache(maxsize=None)
def _num_tensorcores():
    try:
        kind = jax.devices()[0].device_kind.lower()
    except Exception:
        return 1
    # v7x has 2 TensorCores per chip; v5e / v6e have 1.
    return 2 if ("v7" in kind or "7x" in kind) else 1


# ----------------------------------------------------------------------------
# Pallas kernels
# ----------------------------------------------------------------------------
def _make_lstm_kernel(n_steps):
    """LSTM recurrence for one batch shard, whole time range in one invocation."""

    def kernel(x_ref, wih_ref, whh_ref, b_ref, out_ref, pg_ref):
        # x_ref  : (Tp, Bb, Ep)   f32 time-major inputs (zero padded)
        # wih_ref: (Ep, 4*Hp)     bf16, gate order [i|f|o|g]
        # whh_ref: (Hp, 4*Hp)     bf16, gate order [i|f|o|g]
        # b_ref  : (1, 4*Hp)      f32 fused bias (b_ih + b_hh)
        # out_ref: (Bb, Tp*Hp)    f32 batch-first hiddens, step t -> lane block t
        # pg_ref : (Tp*Bb, 4*Hp)  f32 scratch: pre-computed input projections
        tp, bb, ep = x_ref.shape
        hp = whh_ref.shape[0]

        # -- Prologue: ONE big MXU GEMM for the input projection (+ hoisted bias)
        x2 = x_ref[...].reshape(tp * bb, ep).astype(jnp.bfloat16)   # free merge
        pg_ref[...] = jnp.dot(x2, wih_ref[...],
                              preferred_element_type=jnp.float32) + b_ref[...]

        w_hh = whh_ref[...]                        # loop-invariant, hoisted

        h_bf = jnp.zeros((bb, hp), jnp.bfloat16)   # h_{t-1} as MXU operand
        c = jnp.zeros((bb, hp), jnp.float32)

        # Fully-unrolled recurrence: static trip count == true caption length,
        # so every slice offset is static and the scheduler sees across steps.
        for t in range(n_steps):
            gates = pg_ref[t * bb:(t + 1) * bb, :]
            if t > 0:                              # h_0 == 0 -> skip first dot
                gates = gates + jnp.dot(h_bf, w_hh,
                                        preferred_element_type=jnp.float32)
            # Gate layout [i|f|o|g]: one sigmoid over 3*Hp, one tanh over Hp.
            sig = jax.nn.sigmoid(gates[:, :3 * hp])
            i_g = sig[:, 0 * hp:1 * hp]
            f_g = sig[:, 1 * hp:2 * hp]
            o_g = sig[:, 2 * hp:3 * hp]
            g_g = jnp.tanh(gates[:, 3 * hp:])
            c = f_g * c + i_g * g_g
            h = o_g * jnp.tanh(c)
            h_bf = h.astype(jnp.bfloat16)
            # Batch-first writeback: lane-aligned block t of (Bb, Tp*Hp).
            out_ref[:, t * hp:(t + 1) * hp] = h

        # Padded time tail was never written -- zero it (VMEM is uninitialised).
        if n_steps < tp:
            out_ref[:, n_steps * hp:] = jnp.zeros(
                (bb, (tp - n_steps) * hp), jnp.float32)

    return kernel


def _linear_kernel(h_ref, w_ref, b_ref, o_ref):
    """Vocab projection for one (B-block, V-block) tile, batch-first layout.

    h_ref: (Bblk, Tp, Hp) f32, w_ref: (Hp, Vblk) bf16, b_ref: (1, Vblk) f32
    o_ref: (Bblk, Tp, Vblk) f32
    """
    bblk, tp, hp = h_ref.shape
    vblk = w_ref.shape[1]
    h2 = h_ref[...].reshape(bblk * tp, hp).astype(jnp.bfloat16)   # free merge
    logits = jnp.dot(h2, w_ref[...],
                     preferred_element_type=jnp.float32) + b_ref[...]
    o_ref[...] = logits.reshape(bblk, tp, vblk)


# ----------------------------------------------------------------------------
# pallas_call wrappers
# ----------------------------------------------------------------------------
def lstm_pallas(x_tbe, w_ih, w_hh, bias, *, n_steps, batch_shards, vmem_limit):
    """x_tbe (Tp, Bp, Ep) f32, w_ih (Ep, 4Hp) bf16, w_hh (Hp, 4Hp) bf16,
    bias (1, 4Hp) f32 -> batch-first hiddens (Bp, Tp*Hp) f32."""
    tp, bp, ep = x_tbe.shape
    hp = w_hh.shape[0]
    bb = bp // batch_shards
    # NOTE: at production T, add a time-chunk ("arbitrary") grid axis and keep
    # h/c in scratch so the resident slab is bounded; the loop-invariant weight
    # specs could also use pipeline_mode=pl.Buffered(1) to drop their 2nd buffer.
    return pl.pallas_call(
        _make_lstm_kernel(n_steps),
        out_shape=jax.ShapeDtypeStruct((bp, tp * hp), jnp.float32),
        grid_spec=pltpu.PrefetchScalarGridSpec(
            num_scalar_prefetch=0,
            grid=(batch_shards,),
            in_specs=[
                pl.BlockSpec((tp, bb, ep), lambda i: (0, i, 0)),
                pl.BlockSpec((ep, 4 * hp), lambda i: (0, 0)),
                pl.BlockSpec((hp, 4 * hp), lambda i: (0, 0)),
                pl.BlockSpec((1, 4 * hp), lambda i: (0, 0)),
            ],
            out_specs=pl.BlockSpec((bb, tp * hp), lambda i: (i, 0)),
            scratch_shapes=[pltpu.VMEM((tp * bb, 4 * hp), jnp.float32)],
        ),
        compiler_params=pltpu.CompilerParams(
            dimension_semantics=("parallel",),     # batch shards -> v7x megacore
            vmem_limit_bytes=vmem_limit,
        ),
    )(x_tbe, w_ih, w_hh, bias)


def _pick_linear_tiles(bp, tp, hp, vpp, budget_bytes):
    """Largest (Bblk, Vblk) whose double-buffered tiles fit the VMEM budget,
    preferring big V blocks (fewer re-reads of the hiddens slab)."""
    def fits(bb_, vb_):
        tile = (bb_ * tp * hp * 4        # hiddens block (f32)
                + hp * vb_ * 2           # weight block (bf16)
                + vb_ * 4                # bias block
                + bb_ * tp * vb_ * 4)    # logits block (f32)
        return 2 * tile <= budget_bytes  # x2: double buffering
    v_cands = [v for v in (vpp, 4096, 2048, 1024, 512, 256, 128)
               if v <= vpp and vpp % v == 0]
    b_cands = [b for b in range(bp, 7, -8) if bp % b == 0]
    for vb in v_cands:
        for bb in b_cands:
            if fits(bb, vb):
                return bb, vb
    return b_cands[-1], 128


def linear_pallas(h_bth, w, b, *, vmem_limit):
    """h_bth (Bp, Tp, Hp) f32, w (Hp, Vpp) bf16, b (1, Vpp) f32
    -> logits (Bp, Tp, Vpp) f32, batch-first (no post-transpose needed)."""
    bp, tp, hp = h_bth.shape
    vpp = w.shape[1]
    bblk, vblk = _pick_linear_tiles(bp, tp, hp, vpp, (vmem_limit * 3) // 5)
    return pl.pallas_call(
        _linear_kernel,
        out_shape=jax.ShapeDtypeStruct((bp, tp, vpp), jnp.float32),
        grid_spec=pltpu.PrefetchScalarGridSpec(
            num_scalar_prefetch=0,
            # V outer / B inner: each (Hp, Vblk) weight block is fetched once;
            # only the (much smaller) hiddens blocks re-stream per V block.
            grid=(vpp // vblk, bp // bblk),
            in_specs=[
                pl.BlockSpec((bblk, tp, hp), lambda v, bi: (bi, 0, 0)),
                pl.BlockSpec((hp, vblk), lambda v, bi: (0, v)),
                pl.BlockSpec((1, vblk), lambda v, bi: (0, v)),
            ],
            out_specs=pl.BlockSpec((bblk, tp, vblk), lambda v, bi: (bi, 0, v)),
        ),
        compiler_params=pltpu.CompilerParams(
            dimension_semantics=("parallel", "parallel"),
            vmem_limit_bytes=vmem_limit,
        ),
    )(h_bth, w, b)


# ----------------------------------------------------------------------------
# One-time parameter preparation (fusion / gate reorder / padding / bf16 cast)
# ----------------------------------------------------------------------------
# Canonical storage uses PyTorch's LSTM gate order (i, f, g, o); the kernels use
# [i, f, o, g] so a single sigmoid covers the first three gate blocks.
_GATE_PERM = (0, 1, 3, 2)   # destination slot d <- source gate _GATE_PERM[d]


def _pad_reorder_gates(w, rows_p, h, hp, dtype):
    rows = w.shape[0]
    out = jnp.zeros((rows_p, 4 * hp), jnp.float32)
    for d, s in enumerate(_GATE_PERM):
        out = out.at[:rows, d * hp:d * hp + h].set(w[:, s * h:(s + 1) * h])
    return out.astype(dtype)


def prepare_params(params):
    """Hoisted out of the per-call forward path (pure latency win at decode)."""
    e = params["w_ih"].shape[0]
    h = params["w_hh"].shape[0]
    v = params["w_out"].shape[1]
    ep, hp, vp = _round_up(e, 128), _round_up(h, 128), _round_up(v, 128)
    return {
        "embed": params["embed"],                                  # f32 gather table
        "w_ih_p": _pad_reorder_gates(params["w_ih"], ep, h, hp, jnp.bfloat16),
        "w_hh_p": _pad_reorder_gates(params["w_hh"], hp, h, hp, jnp.bfloat16),
        "b_gates": _pad_reorder_gates(params["b_lstm"], 1, h, hp, jnp.float32),
        "w_out_p": (jnp.zeros((hp, vp), jnp.float32)
                    .at[:h, :v].set(params["w_out"]).astype(jnp.bfloat16)),
        "b_out_p": jnp.zeros((1, vp), jnp.float32).at[:, :v].set(params["b_out"]),
    }


# ----------------------------------------------------------------------------
# Forward pass (mirror of DecoderRNN.forward)
# ----------------------------------------------------------------------------
@jax.jit
def decoder_forward(prep, features, captions):
    """features (B, E) f32, captions (B, Tc) int32 -> logits (B, Tc, V) f32."""
    b_sz, e_sz = features.shape
    t_sz = captions.shape[1]                     # T = Tc (features prepended)
    v_sz = prep["embed"].shape[0]
    ep = prep["w_ih_p"].shape[0]
    hp = prep["w_hh_p"].shape[0]

    # Embedding lookup gathered directly in time-major order.
    # TODO(synk): the per-token embedding row gather stays in plain JAX; a
    # data-dependent row gather has no clean rectangular BlockSpec.
    emb_t = prep["embed"][captions[:, :-1].T]                      # (T-1, B, E)
    x_tbe = jnp.concatenate([features[None], emb_t], axis=0)       # (T, B, E)

    # Layout padding only (sublane 8 / lane 128); the recurrence still runs
    # exactly t_sz steps and zero padding keeps it exact.
    bp = _round_up(b_sz, 8)
    tp = _round_up(t_sz, 8)
    x_p = jnp.zeros((tp, bp, ep), jnp.float32).at[:t_sz, :b_sz, :e_sz].set(x_tbe)

    vmem_limit = _vmem_limit_bytes()
    num_tc = _num_tensorcores()
    batch_shards = num_tc if (num_tc > 1 and bp % (8 * num_tc) == 0) else 1

    hid2d = lstm_pallas(x_p, prep["w_ih_p"], prep["w_hh_p"], prep["b_gates"],
                        n_steps=t_sz, batch_shards=batch_shards,
                        vmem_limit=vmem_limit)                     # (Bp, Tp*Hp)
    hid_bth = hid2d.reshape(bp, tp, hp)          # free metadata reshape, no copy

    logits_p = linear_pallas(hid_bth, prep["w_out_p"], prep["b_out_p"],
                             vmem_limit=vmem_limit)                # (Bp, Tp, Vpp)
    return logits_p[:b_sz, :t_sz, :v_sz]                           # (B, T, V)


# ----------------------------------------------------------------------------
# Pure-JAX f32 reference (for correctness check)
# ----------------------------------------------------------------------------
def decoder_forward_ref(params, features, captions):
    emb = params["embed"][captions[:, :-1]]
    x = jnp.concatenate([features[:, None, :], emb], axis=1)       # (B, T, E)
    H = params["w_hh"].shape[0]

    def step(carry, x_t):
        h, c = carry
        gates = x_t @ params["w_ih"] + h @ params["w_hh"] + params["b_lstm"][0]
        i_g = jax.nn.sigmoid(gates[:, 0 * H:1 * H])
        f_g = jax.nn.sigmoid(gates[:, 1 * H:2 * H])
        g_g = jnp.tanh(gates[:, 2 * H:3 * H])
        o_g = jax.nn.sigmoid(gates[:, 3 * H:4 * H])
        c = f_g * c + i_g * g_g
        h = o_g * jnp.tanh(c)
        return (h, c), h

    B = x.shape[0]
    h0 = jnp.zeros((B, H), jnp.float32)
    c0 = jnp.zeros((B, H), jnp.float32)
    _, hs = lax.scan(step, (h0, c0), jnp.transpose(x, (1, 0, 2)))  # (T, B, H)
    hiddens = jnp.transpose(hs, (1, 0, 2))                         # (B, T, H)
    return hiddens @ params["w_out"] + params["b_out"][0]


# ----------------------------------------------------------------------------
# Deterministic parameter init + smoke test
# ----------------------------------------------------------------------------
def init_params(key, embed_size, hidden_size, vocab_size):
    ks = jax.random.split(key, 6)
    s = 1.0 / jnp.sqrt(hidden_size)
    return {
        "embed": jax.random.normal(ks[0], (vocab_size, embed_size), jnp.float32),
        # LSTM weights stored pre-transposed: x @ W_ih + h @ W_hh + b
        "w_ih": jax.random.uniform(ks[1], (embed_size, 4 * hidden_size),
                                   jnp.float32, -s, s),
        "w_hh": jax.random.uniform(ks[2], (hidden_size, 4 * hidden_size),
                                   jnp.float32, -s, s),
        # b_ih + b_hh folded into one (1, 4H) bias row
        "b_lstm": jax.random.uniform(ks[3], (1, 4 * hidden_size),
                                     jnp.float32, -s, s),
        "w_out": jax.random.uniform(ks[4], (hidden_size, vocab_size),
                                    jnp.float32, -s, s),
        "b_out": jax.random.uniform(ks[5], (1, vocab_size),
                                    jnp.float32, -s, s),
    }


if __name__ == "__main__":
    # Small shapes consistent with DecoderRNN.forward
    B, Tc = 2, 8          # batch, caption length (LSTM runs T = Tc steps)
    embed_size = 32
    hidden_size = 32
    vocab_size = 64

    key = jax.random.PRNGKey(0)
    k_par, k_feat, k_cap = jax.random.split(key, 3)

    params = init_params(k_par, embed_size, hidden_size, vocab_size)
    features = jax.random.normal(k_feat, (B, embed_size), jnp.float32)
    captions = jax.random.randint(k_cap, (B, Tc), 0, vocab_size, jnp.int32)

    prep = prepare_params(params)        # one-time weight fusion / pad / bf16 cast
    out = decoder_forward(prep, features, captions)
    out = jax.block_until_ready(out)

    ref = decoder_forward_ref(params, features, captions)
    assert out.shape == (B, Tc, vocab_size), out.shape
    # bf16 matmul operands (f32 accumulation) => small deviation vs f32 reference.
    assert jnp.allclose(out, ref, atol=5e-2, rtol=5e-2), (
        float(jnp.max(jnp.abs(out - ref)))
    )

    print("KERNEL_OK")
</pallas_src>

<mosaic_0001>
module attributes {stable_mosaic.version = 11 : i64} {
  func.func @kernel(%arg0: i32, %arg1: memref<8x8x128xf32, #tpu.memory_space<vmem>>, %arg2: memref<128x512xbf16, #tpu.memory_space<vmem>>, %arg3: memref<128x512xbf16, #tpu.memory_space<vmem>>, %arg4: memref<1x512xf32, #tpu.memory_space<vmem>>, %arg5: memref<8x1024xf32, #tpu.memory_space<vmem>>, %arg6: memref<64x512xf32, #tpu.memory_space<vmem>>) attributes {dimension_semantics = [#tpu.dimension_semantics<parallel>], iteration_bounds = array<i64: 1>, scalar_prefetch = 0 : i64, scratch_operands = 1 : i64, tpu.core_type = #tpu.core_type<tc>, window_params = [{transform_indices = @transform_0, window_bounds = array<i64: 8, 8, 128>}, {pipeline_mode = #tpu.pipeline_mode<synchronous>, transform_indices = @transform_1, window_bounds = array<i64: 128, 512>}, {pipeline_mode = #tpu.pipeline_mode<synchronous>, transform_indices = @transform_2, window_bounds = array<i64: 128, 512>}, {pipeline_mode = #tpu.pipeline_mode<synchronous>, transform_indices = @transform_3, window_bounds = array<i64: 1, 512>}, {transform_indices = @transform_4, window_bounds = array<i64: 8, 1024>}]} {
    %c0 = arith.constant 0 : index
    %c0_0 = arith.constant 0 : index
    %c0_1 = arith.constant 0 : index
    %0 = vector.load %arg1[%c0, %c0_0, %c0_1] : memref<8x8x128xf32, #tpu.memory_space<vmem>>, vector<8x8x128xf32>
    %1 = vector.shape_cast %0 : vector<8x8x128xf32> to vector<64x128xf32>
    %2 = arith.truncf %1 : vector<64x128xf32> to vector<64x128xbf16>
    %c0_2 = arith.constant 0 : index
    %c0_3 = arith.constant 0 : index
    %3 = vector.load %arg2[%c0_2, %c0_3] : memref<128x512xbf16, #tpu.memory_space<vmem>>, vector<128x512xbf16>
    %cst = arith.constant dense<0.000000e+00> : vector<64x512xf32>
    %4 = tpu.matmul %2, %3, %cst {dimension_numbers = #tpu.dot_dimension_numbers<[1], [0], [0], [1], [0, 0, 1, 1], [], []>} : vector<64x128xbf16>, vector<128x512xbf16>, vector<64x512xf32> -> vector<64x512xf32>
    %c0_4 = arith.constant 0 : index
    %c0_5 = arith.constant 0 : index
    %5 = vector.load %arg4[%c0_4, %c0_5] : memref<1x512xf32, #tpu.memory_space<vmem>>, vector<1x512xf32>
    %6 = vector.broadcast %5 : vector<1x512xf32> to vector<64x512xf32>
    %7 = arith.addf %4, %6 : vector<64x512xf32>
    %c0_6 = arith.constant 0 : index
    %c0_7 = arith.constant 0 : index
    %8 = vector.load %arg6[%c0_6, %c0_7] : memref<64x512xf32, #tpu.memory_space<vmem>>, vector<64x512xf32>
    tpu.vector_store %arg6[%c0_6, %c0_7], %7 {strides = array<i32>} : memref<64x512xf32, #tpu.memory_space<vmem>>, vector<64x512xf32>,
    %c0_8 = arith.constant 0 : index
    %c0_9 = arith.constant 0 : index
    %9 = vector.load %arg3[%c0_8, %c0_9] : memref<128x512xbf16, #tpu.memory_space<vmem>>, vector<128x512xbf16>
    %cst_10 = arith.constant 0.000000e+00 : f32
    %10 = vector.broadcast %cst_10 : f32 to vector<8x128xf32>
    %c0_11 = arith.constant 0 : index
    %c0_12 = arith.constant 0 : index
    %11 = vector.load %arg6[%c0_11, %c0_12] : memref<64x512xf32, #tpu.memory_space<vmem>>, vector<8x512xf32>
    %12 = vector.extract_strided_slice %11 {offsets = [0, 0], sizes = [8, 384], strides = [1, 1]} : vector<8x512xf32> to vector<8x384xf32>
    %13 = arith.negf %12 : vector<8x384xf32>
    %14 = math.exp %13 : vector<8x384xf32>
    %cst_13 = arith.constant 1.000000e+00 : f32
    %15 = vector.broadcast %cst_13 : f32 to vector<8x384xf32>
    %16 = arith.addf %15, %14 : vector<8x384xf32>
    %17 = arith.divf %15, %16 : vector<8x384xf32>
    %18 = vector.extract_strided_slice %17 {offsets = [0, 0], sizes = [8, 128], strides = [1, 1]} : vector<8x384xf32> to vector<8x128xf32>
    %19 = vector.extract_strided_slice %17 {offsets = [0, 128], sizes = [8, 128], strides = [1, 1]} : vector<8x384xf32> to vector<8x128xf32>
    %20 = vector.extract_strided_slice %17 {offsets = [0, 256], sizes = [8, 128], strides = [1, 1]} : vector<8x384xf32> to vector<8x128xf32>
    %21 = vector.extract_strided_slice %11 {offsets = [0, 384], sizes = [8, 128], strides = [1, 1]} : vector<8x512xf32> to vector<8x128xf32>
    %22 = math.tanh %21 : vector<8x128xf32>
    %23 = arith.mulf %19, %10 : vector<8x128xf32>
    %24 = arith.mulf %18, %22 : vector<8x128xf32>
    %25 = arith.addf %23, %24 : vector<8x128xf32>
    %26 = math.tanh %25 : vector<8x128xf32>
    %27 = arith.mulf %20, %26 : vector<8x128xf32>
    %28 = arith.truncf %27 : vector<8x128xf32> to vector<8x128xbf16>
    %c0_14 = arith.constant 0 : index
    %c0_15 = arith.constant 0 : index
    %29 = vector.load %arg5[%c0_14, %c0_15] : memref<8x1024xf32, #tpu.memory_space<vmem>>, vector<8x128xf32>
    tpu.vector_store %arg5[%c0_14, %c0_15], %27 {strides = array<i32>} : memref<8x1024xf32, #tpu.memory_space<vmem>>, vector<8x128xf32>,
    %c8 = arith.constant 8 : index
    %c0_16 = arith.constant 0 : index
    %30 = vector.load %arg6[%c8, %c0_16] : memref<64x512xf32, #tpu.memory_space<vmem>>, vector<8x512xf32>
    %cst_17 = arith.constant dense<0.000000e+00> : vector<8x512xf32>
    %31 = tpu.matmul %28, %9, %cst_17 {dimension_numbers = #tpu.dot_dimension_numbers<[1], [0], [0], [1], [0, 0, 1, 1], [], []>} : vector<8x128xbf16>, vector<128x512xbf16>, vector<8x512xf32> -> vector<8x512xf32>
    %32 = arith.addf %30, %31 : vector<8x512xf32>
    %33 = vector.extract_strided_slice %32 {offsets = [0, 0], sizes = [8, 384], strides = [1, 1]} : vector<8x512xf32> to vector<8x384xf32>
    %34 = arith.negf %33 : vector<8x384xf32>
    %35 = math.exp %34 : vector<8x384xf32>
    %cst_18 = arith.constant 1.000000e+00 : f32
    %36 = vector.broadcast %cst_18 : f32 to vector<8x384xf32>
    %37 = arith.addf %36, %35 : vector<8x384xf32>
    %38 = arith.divf %36, %37 : vector<8x384xf32>
    %39 = vector.extract_strided_slice %38 {offsets = [0, 0], sizes = [8, 128], strides = [1, 1]} : vector<8x384xf32> to vector<8x128xf32>
    %40 = vector.extract_strided_slice %38 {offsets = [0, 128], sizes = [8, 128], strides = [1, 1]} : vector<8x384xf32> to vector<8x128xf32>
    %41 = vector.extract_strided_slice %38 {offsets = [0, 256], sizes = [8, 128], strides = [1, 1]} : vector<8x384xf32> to vector<8x128xf32>
    %42 = vector.extract_strided_slice %32 {offsets = [0, 384], sizes = [8, 128], strides = [1, 1]} : vector<8x512xf32> to vector<8x128xf32>
    %43 = math.tanh %42 : vector<8x128xf32>
    %44 = arith.mulf %40, %25 : vector<8x128xf32>
    %45 = arith.mulf %39, %43 : vector<8x128xf32>
    %46 = arith.addf %44, %45 : vector<8x128xf32>
    %47 = math.tanh %46 : vector<8x128xf32>
    %48 = arith.mulf %41, %47 : vector<8x128xf32>
    %49 = arith.truncf %48 : vector<8x128xf32> to vector<8x128xbf16>
    %c0_19 = arith.constant 0 : index
    %c128 = arith.constant 128 : index
    %50 = vector.load %arg5[%c0_19, %c128] : memref<8x1024xf32, #tpu.memory_space<vmem>>, vector<8x128xf32>
    tpu.vector_store %arg5[%c0_19, %c128], %48 {strides = array<i32>} : memref<8x1024xf32, #tpu.memory_space<vmem>>, vector<8x128xf32>,
    %c16 = arith.constant 16 : index
    %c0_20 = arith.constant 0 : index
    %51 = vector.load %arg6[%c16, %c0_20] : memref<64x512xf32, #tpu.memory_space<vmem>>, vector<8x512xf32>
    %cst_21 = arith.constant dense<0.000000e+00> : vector<8x512xf32>
    %52 = tpu.matmul %49, %9, %cst_21 {dimension_numbers = #tpu.dot_dimension_numbers<[1], [0], [0], [1], [0, 0, 1, 1], [], []>} : vector<8x128xbf16>, vector<128x512xbf16>, vector<8x512xf32> -> vector<8x512xf32>
    %53 = arith.addf %51, %52 : vector<8x512xf32>
    %54 = vector.extract_strided_slice %53 {offsets = [0, 0], sizes = [8, 384], strides = [1, 1]} : vector<8x512xf32> to vector<8x384xf32>
    %55 = arith.negf %54 : vector<8x384xf32>
    %56 = math.exp %55 : vector<8x384xf32>
    %cst_22 = arith.constant 1.000000e+00 : f32
    %57 = vector.broadcast %cst_22 : f32 to vector<8x384xf32>
    %58 = arith.addf %57, %56 : vector<8x384xf32>
    %59 = arith.divf %57, %58 : vector<8x384xf32>
    %60 = vector.extract_strided_slice %59 {offsets = [0, 0], sizes = [8, 128], strides = [1, 1]} : vector<8x384xf32> to vector<8x128xf32>
    %61 = vector.extract_strided_slice %59 {offsets = [0, 128], sizes = [8, 128], strides = [1, 1]} : vector<8x384xf32> to vector<8x128xf32>
    %62 = vector.extract_strided_slice %59 {offsets = [0, 256], sizes = [8, 128], strides = [1, 1]} : vector<8x384xf32> to vector<8x128xf32>
    %63 = vector.extract_strided_slice %53 {offsets = [0, 384], sizes = [8, 128], strides = [1, 1]} : vector<8x512xf32> to vector<8x128xf32>
    %64 = math.tanh %63 : vector<8x128xf32>
    %65 = arith.mulf %61, %46 : vector<8x128xf32>
    %66 = arith.mulf %60, %64 : vector<8x128xf32>
    %67 = arith.addf %65, %66 : vector<8x128xf32>
    %68 = math.tanh %67 : vector<8x128xf32>
    %69 = arith.mulf %62, %68 : vector<8x128xf32>
    %70 = arith.truncf %69 : vector<8x128xf32> to vector<8x128xbf16>
    %c0_23 = arith.constant 0 : index
    %c256 = arith.constant 256 : index
    %71 = vector.load %arg5[%c0_23, %c256] : memref<8x1024xf32, #tpu.memory_space<vmem>>, vector<8x128xf32>
    tpu.vector_store %arg5[%c0_23, %c256], %69 {strides = array<i32>} : memref<8x1024xf32, #tpu.memory_space<vmem>>, vector<8x128xf32>,
    %c24 = arith.constant 24 : index
    %c0_24 = arith.constant 0 : index
    %72 = vector.load %arg6[%c24, %c0_24] : memref<64x512xf32, #tpu.memory_space<vmem>>, vector<8x512xf32>
    %cst_25 = arith.constant dense<0.000000e+00> : vector<8x512xf32>
    %73 = tpu.matmul %70, %9, %cst_25 {dimension_numbers = #tpu.dot_dimension_numbers<[1], [0], [0], [1], [0, 0, 1, 1], [], []>} : vector<8x128xbf16>, vector<128x512xbf16>, vector<8x512xf32> -> vector<8x512xf32>
    %74 = arith.addf %72, %73 : vector<8x512xf32>
    %75 = vector.extract_strided_slice %74 {offsets = [0, 0], sizes = [8, 384], strides = [1, 1]} : vector<8x512xf32> to vector<8x384xf32>
    %76 = arith.negf %75 : vector<8x384xf32>
    %77 = math.exp %76 : vector<8x384xf32>
    %cst_26 = arith.constant 1.000000e+00 : f32
    %78 = vector.broadcast %cst_26 : f32 to vector<8x384xf32>
    %79 = arith.addf %78, %77 : vector<8x384xf32>
    %80 = arith.divf %78, %79 : vector<8x384xf32>
    %81 = vector.extract_strided_slice %80 {offsets = [0, 0], sizes = [8, 128], strides = [1, 1]} : vector<8x384xf32> to vector<8x128xf32>
    %82 = vector.extract_strided_slice %80 {offsets = [0, 128], sizes = [8, 128], strides = [1, 1]} : vector<8x384xf32> to vector<8x128xf32>
    %83 = vector.extract_strided_slice %80 {offsets = [0, 256], sizes = [8, 128], strides = [1, 1]} : vector<8x384xf32> to vector<8x128xf32>
    %84 = vector.extract_strided_slice %74 {offsets = [0, 384], sizes = [8, 128], strides = [1, 1]} : vector<8x512xf32> to vector<8x128xf32>
    %85 = math.tanh %84 : vector<8x128xf32>
    %86 = arith.mulf %82, %67 : vector<8x128xf32>
    %87 = arith.mulf %81, %85 : vector<8x128xf32>
    %88 = arith.addf %86, %87 : vector<8x128xf32>
    %89 = math.tanh %88 : vector<8x128xf32>
    %90 = arith.mulf %83, %89 : vector<8x128xf32>
    %91 = arith.truncf %90 : vector<8x128xf32> to vector<8x128xbf16>
    %c0_27 = arith.constant 0 : index
    %c384 = arith.constant 384 : index
    %92 = vector.load %arg5[%c0_27, %c384] : memref<8x1024xf32, #tpu.memory_space<vmem>>, vector<8x128xf32>
    tpu.vector_store %arg5[%c0_27, %c384], %90 {strides = array<i32>} : memref<8x1024xf32, #tpu.memory_space<vmem>>, vector<8x128xf32>,
    %c32 = arith.constant 32 : index
    %c0_28 = arith.constant 0 : index
    %93 = vector.load %arg6[%c32, %c0_28] : memref<64x512xf32, #tpu.memory_space<vmem>>, vector<8x512xf32>
    %cst_29 = arith.constant dense<0.000000e+00> : vector<8x512xf32>
    %94 = tpu.matmul %91, %9, %cst_29 {dimension_numbers = #tpu.dot_dimension_numbers<[1], [0], [0], [1], [0, 0, 1, 1], [], []>} : vector<8x128xbf16>, vector<128x512xbf16>, vector<8x512xf32> -> vector<8x512xf32>
    %95 = arith.addf %93, %94 : vector<8x512xf32>
    %96 = vector.extract_strided_slice %95 {offsets = [0, 0], sizes = [8, 384], strides = [1, 1]} : vector<8x512xf32> to vector<8x384xf32>
    %97 = arith.negf %96 : vector<8x384xf32>
    %98 = math.exp %97 : vector<8x384xf32>
    %cst_30 = arith.constant 1.000000e+00 : f32
    %99 = vector.broadcast %cst_30 : f32 to vector<8x384xf32>
    %100 = arith.addf %99, %98 : vector<8x384xf32>
    %101 = arith.divf %99, %100 : vector<8x384xf32>
    %102 = vector.extract_strided_slice %101 {offsets = [0, 0], sizes = [8, 128], strides = [1, 1]} : vector<8x384xf32> to vector<8x128xf32>
    %103 = vector.extract_strided_slice %101 {offsets = [0, 128], sizes = [8, 128], strides = [1, 1]} : vector<8x384xf32> to vector<8x128xf32>
    %104 = vector.extract_strided_slice %101 {offsets = [0, 256], sizes = [8, 128], strides = [1, 1]} : vector<8x384xf32> to vector<8x128xf32>
    %105 = vector.extract_strided_slice %95 {offsets = [0, 384], sizes = [8, 128], strides = [1, 1]} : vector<8x512xf32> to vector<8x128xf32>
    %106 = math.tanh %105 : vector<8x128xf32>
    %107 = arith.mulf %103, %88 : vector<8x128xf32>
    %108 = arith.mulf %102, %106 : vector<8x128xf32>
    %109 = arith.addf %107, %108 : vector<8x128xf32>
    %110 = math.tanh %109 : vector<8x128xf32>
    %111 = arith.mulf %104, %110 : vector<8x128xf32>
    %112 = arith.truncf %111 : vector<8x128xf32> to vector<8x128xbf16>
    %c0_31 = arith.constant 0 : index
    %c512 = arith.constant 512 : index
    %113 = vector.load %arg5[%c0_31, %c512] : memref<8x1024xf32, #tpu.memory_space<vmem>>, vector<8x128xf32>
    tpu.vector_store %arg5[%c0_31, %c512], %111 {strides = array<i32>} : memref<8x1024xf32, #tpu.memory_space<vmem>>, vector<8x128xf32>,
    %c40 = arith.constant 40 : index
    %c0_32 = arith.constant 0 : index
    %114 = vector.load %arg6[%c40, %c0_32] : memref<64x512xf32, #tpu.memory_space<vmem>>, vector<8x512xf32>
    %cst_33 = arith.constant dense<0.000000e+00> : vector<8x512xf32>
    %115 = tpu.matmul %112, %9, %cst_33 {dimension_numbers = #tpu.dot_dimension_numbers<[1], [0], [0], [1], [0, 0, 1, 1], [], []>} : vector<8x128xbf16>, vector<128x512xbf16>, vector<8x512xf32> -> vector<8x512xf32>
    %116 = arith.addf %114, %115 : vector<8x512xf32>
    %117 = vector.extract_strided_slice %116 {offsets = [0, 0], sizes = [8, 384], strides = [1, 1]} : vector<8x512xf32> to vector<8x384xf32>
    %118 = arith.negf %117 : vector<8x384xf32>
    %119 = math.exp %118 : vector<8x384xf32>
    %cst_34 = arith.constant 1.000000e+00 : f32
    %120 = vector.broadcast %cst_34 : f32 to vector<8x384xf32>
    %121 = arith.addf %120, %119 : vector<8x384xf32>
    %122 = arith.divf %120, %121 : vector<8x384xf32>
    %123 = vector.extract_strided_slice %122 {offsets = [0, 0], sizes = [8, 128], strides = [1, 1]} : vector<8x384xf32> to vector<8x128xf32>
    %124 = vector.extract_strided_slice %122 {offsets = [0, 128], sizes = [8, 128], strides = [1, 1]} : vector<8x384xf32> to vector<8x128xf32>
    %125 = vector.extract_strided_slice %122 {offsets = [0, 256], sizes = [8, 128], strides = [1, 1]} : vector<8x384xf32> to vector<8x128xf32>
    %126 = vector.extract_strided_slice %116 {offsets = [0, 384], sizes = [8, 128], strides = [1, 1]} : vector<8x512xf32> to vector<8x128xf32>
    %127 = math.tanh %126 : vector<8x128xf32>
    %128 = arith.mulf %124, %109 : vector<8x128xf32>
    %129 = arith.mulf %123, %127 : vector<8x128xf32>
    %130 = arith.addf %128, %129 : vector<8x128xf32>
    %131 = math.tanh %130 : vector<8x128xf32>
    %132 = arith.mulf %125, %131 : vector<8x128xf32>
    %133 = arith.truncf %132 : vector<8x128xf32> to vector<8x128xbf16>
    %c0_35 = arith.constant 0 : index
    %c640 = arith.constant 640 : index
    %134 = vector.load %arg5[%c0_35, %c640] : memref<8x1024xf32, #tpu.memory_space<vmem>>, vector<8x128xf32>
    tpu.vector_store %arg5[%c0_35, %c640], %132 {strides = array<i32>} : memref<8x1024xf32, #tpu.memory_space<vmem>>, vector<8x128xf32>,
    %c48 = arith.constant 48 : index
    %c0_36 = arith.constant 0 : index
    %135 = vector.load %arg6[%c48, %c0_36] : memref<64x512xf32, #tpu.memory_space<vmem>>, vector<8x512xf32>
    %cst_37 = arith.constant dense<0.000000e+00> : vector<8x512xf32>
    %136 = tpu.matmul %133, %9, %cst_37 {dimension_numbers = #tpu.dot_dimension_numbers<[1], [0], [0], [1], [0, 0, 1, 1], [], []>} : vector<8x128xbf16>, vector<128x512xbf16>, vector<8x512xf32> -> vector<8x512xf32>
    %137 = arith.addf %135, %136 : vector<8x512xf32>
    %138 = vector.extract_strided_slice %137 {offsets = [0, 0], sizes = [8, 384], strides = [1, 1]} : vector<8x512xf32> to vector<8x384xf32>
    %139 = arith.negf %138 : vector<8x384xf32>
    %140 = math.exp %139 : vector<8x384xf32>
    %cst_38 = arith.constant 1.000000e+00 : f32
    %141 = vector.broadcast %cst_38 : f32 to vector<8x384xf32>
    %142 = arith.addf %141, %140 : vector<8x384xf32>
    %143 = arith.divf %141, %142 : vector<8x384xf32>
    %144 = vector.extract_strided_slice %143 {offsets = [0, 0], sizes = [8, 128], strides = [1, 1]} : vector<8x384xf32> to vector<8x128xf32>
    %145 = vector.extract_strided_slice %143 {offsets = [0, 128], sizes = [8, 128], strides = [1, 1]} : vector<8x384xf32> to vector<8x128xf32>
    %146 = vector.extract_strided_slice %143 {offsets = [0, 256], sizes = [8, 128], strides = [1, 1]} : vector<8x384xf32> to vector<8x128xf32>
    %147 = vector.extract_strided_slice %137 {offsets = [0, 384], sizes = [8, 128], strides = [1, 1]} : vector<8x512xf32> to vector<8x128xf32>
    %148 = math.tanh %147 : vector<8x128xf32>
    %149 = arith.mulf %145, %130 : vector<8x128xf32>
    %150 = arith.mulf %144, %148 : vector<8x128xf32>
    %151 = arith.addf %149, %150 : vector<8x128xf32>
    %152 = math.tanh %151 : vector<8x128xf32>
    %153 = arith.mulf %146, %152 : vector<8x128xf32>
    %154 = arith.truncf %153 : vector<8x128xf32> to vector<8x128xbf16>
    %c0_39 = arith.constant 0 : index
    %c768 = arith.constant 768 : index
    %155 = vector.load %arg5[%c0_39, %c768] : memref<8x1024xf32, #tpu.memory_space<vmem>>, vector<8x128xf32>
    tpu.vector_store %arg5[%c0_39, %c768], %153 {strides = array<i32>} : memref<8x1024xf32, #tpu.memory_space<vmem>>, vector<8x128xf32>,
    %c56 = arith.constant 56 : index
    %c0_40 = arith.constant 0 : index
    %156 = vector.load %arg6[%c56, %c0_40] : memref<64x512xf32, #tpu.memory_space<vmem>>, vector<8x512xf32>
    %cst_41 = arith.constant dense<0.000000e+00> : vector<8x512xf32>
    %157 = tpu.matmul %154, %9, %cst_41 {dimension_numbers = #tpu.dot_dimension_numbers<[1], [0], [0], [1], [0, 0, 1, 1], [], []>} : vector<8x128xbf16>, vector<128x512xbf16>, vector<8x512xf32> -> vector<8x512xf32>
    %158 = arith.addf %156, %157 : vector<8x512xf32>
    %159 = vector.extract_strided_slice %158 {offsets = [0, 0], sizes = [8, 384], strides = [1, 1]} : vector<8x512xf32> to vector<8x384xf32>
    %160 = arith.negf %159 : vector<8x384xf32>
    %161 = math.exp %160 : vector<8x384xf32>
    %cst_42 = arith.constant 1.000000e+00 : f32
    %162 = vector.broadcast %cst_42 : f32 to vector<8x384xf32>
    %163 = arith.addf %162, %161 : vector<8x384xf32>
    %164 = arith.divf %162, %163 : vector<8x384xf32>
    %165 = vector.extract_strided_slice %164 {offsets = [0, 0], sizes = [8, 128], strides = [1, 1]} : vector<8x384xf32> to vector<8x128xf32>
    %166 = vector.extract_strided_slice %164 {offsets = [0, 128], sizes = [8, 128], strides = [1, 1]} : vector<8x384xf32> to vector<8x128xf32>
    %167 = vector.extract_strided_slice %164 {offsets = [0, 256], sizes = [8, 128], strides = [1, 1]} : vector<8x384xf32> to vector<8x128xf32>
    %168 = vector.extract_strided_slice %158 {offsets = [0, 384], sizes = [8, 128], strides = [1, 1]} : vector<8x512xf32> to vector<8x128xf32>
    %169 = math.tanh %168 : vector<8x128xf32>
    %170 = arith.mulf %166, %151 : vector<8x128xf32>
    %171 = arith.mulf %165, %169 : vector<8x128xf32>
    %172 = arith.addf %170, %171 : vector<8x128xf32>
    %173 = math.tanh %172 : vector<8x128xf32>
    %174 = arith.mulf %167, %173 : vector<8x128xf32>
    %c0_43 = arith.constant 0 : index
    %c896 = arith.constant 896 : index
    %175 = vector.load %arg5[%c0_43, %c896] : memref<8x1024xf32, #tpu.memory_space<vmem>>, vector<8x128xf32>
    tpu.vector_store %arg5[%c0_43, %c896], %174 {strides = array<i32>} : memref<8x1024xf32, #tpu.memory_space<vmem>>, vector<8x128xf32>,
    return
  }
  func.func @transform_0(%arg0: i32) -> (i32, i32, i32) {
    %c0_i32 = arith.constant 0 : i32
    %c0_i32_0 = arith.constant 0 : i32
    %c0_i32_1 = arith.constant 0 : i32
    return %c0_i32, %arg0, %c0_i32_0 : i32, i32, i32
  }
  func.func @transform_1(%arg0: i32) -> (i32, i32) {
    %c0_i32 = arith.constant 0 : i32
    %c0_i32_0 = arith.constant 0 : i32
    %c0_i32_1 = arith.constant 0 : i32
    return %c0_i32, %c0_i32_0 : i32, i32
  }
  func.func @transform_2(%arg0: i32) -> (i32, i32) {
    %c0_i32 = arith.constant 0 : i32
    %c0_i32_0 = arith.constant 0 : i32
    %c0_i32_1 = arith.constant 0 : i32
    return %c0_i32, %c0_i32_0 : i32, i32
  }
  func.func @transform_3(%arg0: i32) -> (i32, i32) {
    %c0_i32 = arith.constant 0 : i32
    %c0_i32_0 = arith.constant 0 : i32
    %c0_i32_1 = arith.constant 0 : i32
    return %c0_i32, %c0_i32_0 : i32, i32
  }
  func.func @transform_4(%arg0: i32) -> (i32, i32) {
    %c0_i32 = arith.constant 0 : i32
    %c0_i32_0 = arith.constant 0 : i32
    return %arg0, %c0_i32 : i32, i32
  }
}

module attributes {stable_mosaic.version = 11 : i64} {
  func.func @_linear_kernel(%arg0: i32, %arg1: i32, %arg2: memref<8x8x128xf32, #tpu.memory_space<vmem>>, %arg3: memref<128x128xbf16, #tpu.memory_space<vmem>>, %arg4: memref<1x128xf32, #tpu.memory_space<vmem>>, %arg5: memref<8x8x128xf32, #tpu.memory_space<vmem>>) attributes {dimension_semantics = [#tpu.dimension_semantics<parallel>, #tpu.dimension_semantics<parallel>], iteration_bounds = array<i64: 1, 1>, scalar_prefetch = 0 : i64, scratch_operands = 0 : i64, tpu.core_type = #tpu.core_type<tc>, window_params = [{transform_indices = @transform_0, window_bounds = array<i64: 8, 8, 128>}, {transform_indices = @transform_1, window_bounds = array<i64: 128, 128>}, {transform_indices = @transform_2, window_bounds = array<i64: 1, 128>}, {transform_indices = @transform_3, window_bounds = array<i64: 8, 8, 128>}]} {
    %c0 = arith.constant 0 : index
    %c0_0 = arith.constant 0 : index
    %c0_1 = arith.constant 0 : index
    %0 = vector.load %arg2[%c0, %c0_0, %c0_1] : memref<8x8x128xf32, #tpu.memory_space<vmem>>, vector<8x8x128xf32>
    %1 = vector.shape_cast %0 : vector<8x8x128xf32> to vector<64x128xf32>
    %2 = arith.truncf %1 : vector<64x128xf32> to vector<64x128xbf16>
    %c0_2 = arith.constant 0 : index
    %c0_3 = arith.constant 0 : index
    %3 = vector.load %arg3[%c0_2, %c0_3] : memref<128x128xbf16, #tpu.memory_space<vmem>>, vector<128x128xbf16>
    %cst = arith.constant dense<0.000000e+00> : vector<64x128xf32>
    %4 = tpu.matmul %2, %3, %cst {dimension_numbers = #tpu.dot_dimension_numbers<[1], [0], [0], [1], [0, 0, 1, 1], [], []>} : vector<64x128xbf16>, vector<128x128xbf16>, vector<64x128xf32> -> vector<64x128xf32>
    %c0_4 = arith.constant 0 : index
    %c0_5 = arith.constant 0 : index
    %5 = vector.load %arg4[%c0_4, %c0_5] : memref<1x128xf32, #tpu.memory_space<vmem>>, vector<1x128xf32>
    %6 = vector.broadcast %5 : vector<1x128xf32> to vector<64x128xf32>
    %7 = arith.addf %4, %6 : vector<64x128xf32>
    %8 = vector.shape_cast %7 : vector<64x128xf32> to vector<8x8x128xf32>
    %c0_6 = arith.constant 0 : index
    %c0_7 = arith.constant 0 : index
    %c0_8 = arith.constant 0 : index
    %9 = vector.load %arg5[%c0_6, %c0_7, %c0_8] : memref<8x8x128xf32, #tpu.memory_space<vmem>>, vector<8x8x128xf32>
    tpu.vector_store %arg5[%c0_6, %c0_7, %c0_8], %8 {strides = array<i32>} : memref<8x8x128xf32, #tpu.memory_space<vmem>>, vector<8x8x128xf32>,
    return
  }
  func.func @transform_0(%arg0: i32, %arg1: i32) -> (i32, i32, i32) {
    %c0_i32 = arith.constant 0 : i32
    %c0_i32_0 = arith.constant 0 : i32
    %c0_i32_1 = arith.constant 0 : i32
    return %arg1, %c0_i32, %c0_i32_0 : i32, i32, i32
  }
  func.func @transform_1(%arg0: i32, %arg1: i32) -> (i32, i32) {
    %c0_i32 = arith.constant 0 : i32
    %c0_i32_0 = arith.constant 0 : i32
    return %c0_i32, %arg0 : i32, i32
  }
  func.func @transform_2(%arg0: i32, %arg1: i32) -> (i32, i32) {
    %c0_i32 = arith.constant 0 : i32
    %c0_i32_0 = arith.constant 0 : i32
    return %c0_i32, %arg0 : i32, i32
  }
  func.func @transform_3(%arg0: i32, %arg1: i32) -> (i32, i32, i32) {
    %c0_i32 = arith.constant 0 : i32
    %c0_i32_0 = arith.constant 0 : i32
    return %arg1, %c0_i32, %arg0 : i32, i32, i32
  }
}

</mosaic_0001>

<llo_original>
// kernel: decoder_forward.3
$region0: #{decoder_forward.3}
  #allocation0 [shape = 'u32[]', space=smem, size = 0x4, offset = 0x4, fixed_abs, tag = 'smem constant byte address 0x4 - core index']
  #allocation1 [shape = 'u32[144,128]{1,0:T(1,128)}', space=vmem, size = 0x12000, scoped, tag = 'internal scratch']
  %s0 = inlined_call_operand.vmem [shape: f32[8,8,128], index: 0, kind: input, shape index: {}]
  %s1 = inlined_call_operand.vmem [shape: bf16[128,128], index: 1, kind: input, shape index: {}]
  %s2 = inlined_call_operand.vmem [shape: f32[1,128], index: 2, kind: input, shape index: {}]
  %s3 = inlined_call_operand.vmem [shape: f32[8,8,128], index: 3, kind: output, shape index: {}]
  %s4 = sld [smem:[#allocation0]]
  $region22: #{decoder_forward.3} parent=0
    _
  %s6 = ssub.s32 1, %s4
  %s7 = scalar_select 0, %s6, %s4
  // Predicated region
  $region2: #{decoder_forward.3} parent=0 // pred_check
    _
  $region3: #{decoder_forward.3} parent=0 // pred_check_branch
    %9 = sbr.rel (0) target = $region5
  $region4: #{decoder_forward.3} parent=0 // pred_region
    _
  $region5: #{decoder_forward.3} parent=0 // pred_fallthru
    _
  // Predicated region
  $region6: #{decoder_forward.3} parent=0 // pred_check
    _
  $region7: #{decoder_forward.3} parent=0 // pred_check_branch
    %11 = sbr.rel (0) target = $region9
  $region8: #{decoder_forward.3} parent=0 // pred_region
    _
  $region9: #{decoder_forward.3} parent=0 // pred_fallthru
    _
  // Predicated region
  $region10: #{decoder_forward.3} parent=0 // pred_check
    _
  $region11: #{decoder_forward.3} parent=0 // pred_check_branch
    %13 = sbr.rel (0) target = $region13
  $region12: #{decoder_forward.3} parent=0 // pred_region
    _
  $region13: #{decoder_forward.3} parent=0 // pred_fallthru
    _
  %v15 = vld [vmem:[%s0] sm:$0xff]
  %v16 = vld [vmem:[%s0 + $0x8] sm:$0xff]
  %v17 = vld [vmem:[%s0 + $0x10] sm:$0xff]
  %v18 = vld [vmem:[%s0 + $0x18] sm:$0xff]
  %v19 = vld [vmem:[%s0 + $0x20] sm:$0xff]
  %v20 = vld [vmem:[%s0 + $0x28] sm:$0xff]
  %v21 = vld [vmem:[%s0 + $0x30] sm:$0xff]
  %v22 = vld [vmem:[%s0 + $0x38] sm:$0xff]
  %v23 = vpack.c.bf16 %v16, %v15
  %v24 = vpack.c.bf16 %v18, %v17
  %v25 = vpack.c.bf16 %v20, %v19
  %v26 = vpack.c.bf16 %v22, %v21
  %v27 = vld [vmem:[%s1] sm:$0xf]
  %v28 = vld [vmem:[%s1 + $0x4] sm:$0xf]
  %v29 = vld [vmem:[%s1 + $0x8] sm:$0xf]
  %v30 = vld [vmem:[%s1 + $0xc] sm:$0xf]
  %v31 = vld [vmem:[%s1 + $0x10] sm:$0xf]
  %v32 = vld [vmem:[%s1 + $0x14] sm:$0xf]
  %v33 = vld [vmem:[%s1 + $0x18] sm:$0xf]
  %v34 = vld [vmem:[%s1 + $0x1c] sm:$0xf]
  %v35 = vld [vmem:[%s1 + $0x20] sm:$0xf]
  %v36 = vld [vmem:[%s1 + $0x24] sm:$0xf]
  %v37 = vld [vmem:[%s1 + $0x28] sm:$0xf]
  %v38 = vld [vmem:[%s1 + $0x2c] sm:$0xf]
  %v39 = vld [vmem:[%s1 + $0x30] sm:$0xf]
  %v40 = vld [vmem:[%s1 + $0x34] sm:$0xf]
  %v41 = vld [vmem:[%s1 + $0x38] sm:$0xf]
  %v42 = vld [vmem:[%s1 + $0x3c] sm:$0xf]
  %v43 = vld [vmem:[%s2] sm:$0x1]
  %v45 = vlaneseq
  %v46 = vshrl.u32 %v45, 7
  %v47 = vsub.s32 0, %v46
  %v48 = vrot.slane %v43, %v47
  %v66 = vunpack.c.l.b16 %v27
  %v67 = vunpack.c.l.b16 %v28
  %v68 = vunpack.c.l.b16 %v29
  %v69 = vunpack.c.l.b16 %v30
  %v70 = vunpack.c.l.b16 %v31
  %v71 = vunpack.c.l.b16 %v32
  %v72 = vunpack.c.l.b16 %v33
  %v73 = vunpack.c.l.b16 %v34
  %v74 = vunpack.c.l.b16 %v35
  %v75 = vunpack.c.l.b16 %v36
  %v76 = vunpack.c.l.b16 %v37
  %v77 = vunpack.c.l.b16 %v38
  %v78 = vunpack.c.l.b16 %v39
  %v79 = vunpack.c.l.b16 %v40
  %v80 = vunpack.c.l.b16 %v41
  %v81 = vunpack.c.l.b16 %v42
  %v82 = vpack.c.b16 %v67, %v66
  %v83 = vpack.c.b16 %v69, %v68
  %v84 = vpack.c.b16 %v71, %v70
  %v85 = vpack.c.b16 %v73, %v72
  %v86 = vpack.c.b16 %v75, %v74
  %v87 = vpack.c.b16 %v77, %v76
  %v88 = vpack.c.b16 %v79, %v78
  %v89 = vpack.c.b16 %v81, %v80
  %98 = vmatprep.subr.bf16.mxu0 0
  %99 = vmatpush1.bf16.msra.mxu0 %v89
  %100 = vmatprep.subr.bf16.mxu0 0
  %101 = vmatpush1.bf16.msra.mxu0 %v88
  %102 = vmatprep.subr.bf16.mxu0 0
  %103 = vmatpush1.bf16.msra.mxu0 %v87
  %104 = vmatprep.subr.bf16.mxu0 0
  %105 = vmatpush1.bf16.msra.mxu0 %v86
  %106 = vmatprep.subr.bf16.mxu0 0
  %107 = vmatpush1.bf16.msra.mxu0 %v85
  %108 = vmatprep.subr.bf16.mxu0 0
  %109 = vmatpush1.bf16.msra.mxu0 %v84
  %110 = vmatprep.subr.bf16.mxu0 0
  %111 = vmatpush1.bf16.msra.mxu0 %v83
  %112 = vmatprep.subr.bf16.mxu0 0
  %113 = vmatpush1.bf16.msra.mxu0 %v82
  %114 = vmatprep.subr.bf16.mxu0 0
  %115 = vmatpush2.bf16.msra.mxu0 0
  %116 = vmatprep.subr.bf16.mxu0 0
  %117 = vmatpush2.bf16.msra.mxu0 0
  %118 = vmatprep.subr.bf16.mxu0 0
  %119 = vmatpush2.bf16.msra.mxu0 0
  %120 = vmatprep.subr.bf16.mxu0 0
  %121 = vmatpush2.bf16.msra.mxu0 0
  %122 = vmatprep.subr.bf16.mxu0 0
  %123 = vmatpush2.bf16.msra.mxu0 0
  %124 = vmatprep.subr.bf16.mxu0 0
  %125 = vmatpush2.bf16.msra.mxu0 0
  %126 = vmatprep.subr.bf16.mxu0 0
  %127 = vmatpush2.bf16.msra.mxu0 0
  %128 = vmatprep.subr.bf16.mxu0 0
  %129 = vmatpush2.bf16.msra.mxu0 0
  %130 = vmatprep.mubr.bf16.mxu0 0
  %131 = vmatmul.mubr.bf16.gmra.mxu0 %v23
  %v132 = vpop.f32.mrf.mxu0
  %v133 = vadd.f32 %v48, %v132
  %v134 = vpop.f32.mrf.mxu0
  %v135 = vpop.f32.mrf.mxu0
  %v136 = vadd.f32 %v48, %v135
  %v137 = vpop.f32.mrf.mxu0
  %138 = vmatprep.mubr.bf16.mxu0 0
  %139 = vmatmul.mubr.bf16.gmra.mxu0 %v24
  %v140 = vpop.f32.mrf.mxu0
  %v141 = vadd.f32 %v48, %v140
  %v142 = vpop.f32.mrf.mxu0
  %v143 = vpop.f32.mrf.mxu0
  %v144 = vadd.f32 %v48, %v143
  %v145 = vpop.f32.mrf.mxu0
  %146 = vmatprep.mubr.bf16.mxu0 0
  %147 = vmatmul.mubr.bf16.gmra.mxu0 %v25
  %v148 = vpop.f32.mrf.mxu0
  %v149 = vadd.f32 %v48, %v148
  %v150 = vpop.f32.mrf.mxu0
  %v151 = vpop.f32.mrf.mxu0
  %v152 = vadd.f32 %v48, %v151
  %v153 = vpop.f32.mrf.mxu0
  %154 = vmatprep.mubr.bf16.mxu0 0
  %155 = vmatmul.mubr.bf16.gmra.mxu0 %v26
  %v156 = vpop.f32.mrf.mxu0
  %v157 = vadd.f32 %v48, %v156
  %v158 = vpop.f32.mrf.mxu0
  %v159 = vpop.f32.mrf.mxu0
  %v160 = vadd.f32 %v48, %v159
  %v161 = vpop.f32.mrf.mxu0
  %162 = vdwg.mxu0
  %163 = vst [vmem:[%s3] sm:$0xff] %v133
  %164 = vst [vmem:[%s3 + $0x8] sm:$0xff] %v136
  %165 = vst [vmem:[%s3 + $0x10] sm:$0xff] %v141
  %166 = vst [vmem:[%s3 + $0x18] sm:$0xff] %v144
  %167 = vst [vmem:[%s3 + $0x20] sm:$0xff] %v149
  %168 = vst [vmem:[%s3 + $0x28] sm:$0xff] %v152
  %169 = vst [vmem:[%s3 + $0x30] sm:$0xff] %v157
  %170 = vst [vmem:[%s3 + $0x38] sm:$0xff] %v160
  // Predicated region
  $region14: #{decoder_forward.3} parent=0 // pred_check
    _
  $region15: #{decoder_forward.3} parent=0 // pred_check_branch
    %172 = sbr.rel (0) target = $region17
  $region16: #{decoder_forward.3} parent=0 // pred_region
    _
  $region17: #{decoder_forward.3} parent=0 // pred_fallthru
    _
  // Predicated region
  $region18: #{decoder_forward.3} parent=0 // pred_check
    _
  $region19: #{decoder_forward.3} parent=0 // pred_check_branch
    %174 = sbr.rel (0) target = $region21
  $region20: #{decoder_forward.3} parent=0 // pred_region
    _
  $region21: #{decoder_forward.3} parent=0 // pred_fallthru
    _

// kernel: decoder_forward.2
$region0: #{decoder_forward.2}
  #allocation0 [shape = 'u32[]', space=smem, size = 0x4, offset = 0x4, fixed_abs, tag = 'smem constant byte address 0x4 - core index']
  #allocation1 [shape = 'u32[144,128]{1,0:T(1,128)}', space=vmem, size = 0x12000, scoped, tag = 'internal scratch']
  #allocation2 [shape = 'f32[64,512]{1,0:T(8,128)}', space=vmem, size = 0x20000, scoped, tag = 'scratch operand']
  %s0 = inlined_call_operand.vmem [shape: f32[8,8,128], index: 0, kind: input, shape index: {}]
  %s1 = inlined_call_operand.vmem [shape: bf16[128,512], index: 1, kind: input, shape index: {}]
  %s2 = inlined_call_operand.hbm [shape: bf16[128,512], index: 2, kind: input, shape index: {}]
  %s3 = inlined_call_operand.vmem [shape: f32[1,512], index: 3, kind: input, shape index: {}]
  %s4 = inlined_call_operand.vmem [shape: f32[8,1024], index: 4, kind: output, shape index: {}]
  %s5 = sld [smem:[#allocation0]]
  $region30: #{decoder_forward.2} parent=0
    _
  %s7 = ssub.s32 1, %s5
  %s8 = scalar_select 0, %s7, %s5
  $region1: #{decoder_forward.2} parent=0
    #allocation3 [shape = 'u8[131072]{0}', space=vmem, size = 0x20000, scoped, tag = 'input window, operand 2, single buffered']
    #allocation4 [shape = 's32[1]{0}', space=sflag, size = 0x4, scoped, tag = 'scoped memory for decoder_forward.2']
    %9 = vsyncpa [#allocation4], 0
    // Predicated region
    $region2: #{decoder_forward.2} parent=1 // pred_check
      _
    $region3: #{decoder_forward.2} parent=1 // pred_check_branch
      %11 = sbr.rel (0) target = $region5
    $region4: #{decoder_forward.2} parent=1 // pred_region
      _
    $region5: #{decoder_forward.2} parent=1 // pred_fallthru
      _
    // Predicated region
    $region6: #{decoder_forward.2} parent=1 // pred_check
      _
    $region7: #{decoder_forward.2} parent=1 // pred_check_branch
      %13 = sbr.rel (0) target = $region9
    $region8: #{decoder_forward.2} parent=1 // pred_region
      _
    $region9: #{decoder_forward.2} parent=1 // pred_fallthru
      _
    // Predicated region
    $region10: #{decoder_forward.2} parent=1 // pred_check
      _
    $region11: #{decoder_forward.2} parent=1 // pred_check_branch
      %15 = sbr.rel (0) target = $region13
    $region12: #{decoder_forward.2} parent=1 // pred_region
      %s17 = ssub.s32 4096, 4096
      %18 = vsyncadd [#allocation4], %s17
      %s19 = sshll.u32 [#allocation3], 4
      %s20 = int_to_ptr.vmem [resolvable:$true] %s19
      %25 = dma.hbm_to_vmem [thread:$0]  %s2, 4096, %s20, [#allocation4], 256, 256, 16
    $region13: #{decoder_forward.2} parent=1 // pred_fallthru
      _
    // Predicated region
    $region14: #{decoder_forward.2} parent=1 // pred_check
      _
    $region15: #{decoder_forward.2} parent=1 // pred_check_branch
      %27 = sbr.rel (0) target = $region17
    $region16: #{decoder_forward.2} parent=1 // pred_region
      _
    $region17: #{decoder_forward.2} parent=1 // pred_fallthru
      _
    // Predicated region
    $region18: #{decoder_forward.2} parent=1 // pred_check
      _
    $region19: #{decoder_forward.2} parent=1 // pred_check_branch
      %29 = sbr.rel (0) target = $region21
    $region20: #{decoder_forward.2} parent=1 // pred_region
      %30 = dma.done [#allocation4], 4096
    $region21: #{decoder_forward.2} parent=1 // pred_fallthru
      _
    %v32 = vld [vmem:[%s0] sm:$0xff]
    %v33 = vld [vmem:[%s0 + $0x8] sm:$0xff]
    %v34 = vld [vmem:[%s0 + $0x10] sm:$0xff]
    %v35 = vld [vmem:[%s0 + $0x18] sm:$0xff]
    %v36 = vld [vmem:[%s0 + $0x20] sm:$0xff]
    %v37 = vld [vmem:[%s0 + $0x28] sm:$0xff]
    %v38 = vld [vmem:[%s0 + $0x30] sm:$0xff]
    %v39 = vld [vmem:[%s0 + $0x38] sm:$0xff]
    %v40 = vpack.c.bf16 %v33, %v32
    %v41 = vpack.c.bf16 %v35, %v34
    %v42 = vpack.c.bf16 %v37, %v36
    %v43 = vpack.c.bf16 %v39, %v38
    %v44 = vld [vmem:[%s1] sm:$0xff]
    %v45 = vld [vmem:[%s1 + $0x8] sm:$0xff]
    %v46 = vld [vmem:[%s1 + $0x10] sm:$0xff]
    %v47 = vld [vmem:[%s1 + $0x18] sm:$0xff]
    %v48 = vld [vmem:[%s1 + $0x20] sm:$0xff]
    %v49 = vld [vmem:[%s1 + $0x28] sm:$0xff]
    %v50 = vld [vmem:[%s1 + $0x30] sm:$0xff]
    %v51 = vld [vmem:[%s1 + $0x38] sm:$0xff]
    %v52 = vld [vmem:[%s1 + $0x40] sm:$0xff]
    %v53 = vld [vmem:[%s1 + $0x48] sm:$0xff]
    %v54 = vld [vmem:[%s1 + $0x50] sm:$0xff]
    %v55 = vld [vmem:[%s1 + $0x58] sm:$0xff]
    %v56 = vld [vmem:[%s1 + $0x60] sm:$0xff]
    %v57 = vld [vmem:[%s1 + $0x68] sm:$0xff]
    %v58 = vld [vmem:[%s1 + $0x70] sm:$0xff]
    %v59 = vld [vmem:[%s1 + $0x78] sm:$0xff]
    %v60 = vld [vmem:[%s1 + $0x80] sm:$0xff]
    %v61 = vld [vmem:[%s1 + $0x88] sm:$0xff]
    %v62 = vld [vmem:[%s1 + $0x90] sm:$0xff]
    %v63 = vld [vmem:[%s1 + $0x98] sm:$0xff]
    %v64 = vld [vmem:[%s1 + $0xa0] sm:$0xff]
    %v65 = vld [vmem:[%s1 + $0xa8] sm:$0xff]
    %v66 = vld [vmem:[%s1 + $0xb0] sm:$0xff]
    %v67 = vld [vmem:[%s1 + $0xb8] sm:$0xff]
    %v68 = vld [vmem:[%s1 + $0xc0] sm:$0xff]
    %v69 = vld [vmem:[%s1 + $0xc8] sm:$0xff]
    %v70 = vld [vmem:[%s1 + $0xd0] sm:$0xff]
    %v71 = vld [vmem:[%s1 + $0xd8] sm:$0xff]
    %v72 = vld [vmem:[%s1 + $0xe0] sm:$0xff]
    %v73 = vld [vmem:[%s1 + $0xe8] sm:$0xff]
    %v74 = vld [vmem:[%s1 + $0xf0] sm:$0xff]
    %v75 = vld [vmem:[%s1 + $0xf8] sm:$0xff]
    %v76 = vld [vmem:[%s3] sm:$0xf]
    %v78 = vlaneseq
    %v79 = vshrl.u32 %v78, 7
    %v80 = vsub.s32 0, %v79
    %v81 = vrot.slane %v76, %v80
    %v82 = vlaneseq
    %v83 = vshrl.u32 %v82, 7
    %v84 = vsub.s32 1, %v83
    %v85 = vrot.slane %v76, %v84
    %v86 = vlaneseq
    %v87 = vshrl.u32 %v86, 7
    %v88 = vsub.s32 2, %v87
    %v89 = vrot.slane %v76, %v88
    %v90 = vlaneseq
    %v91 = vshrl.u32 %v90, 7
    %v92 = vsub.s32 3, %v91
    %v93 = vrot.slane %v76, %v92
    %v130 = vunpack.c.l.b16 %v44
    %v131 = vunpack.c.h.b16 %v44
    %v132 = vunpack.c.l.b16 %v45
    %v133 = vunpack.c.h.b16 %v45
    %v134 = vunpack.c.l.b16 %v46
    %v135 = vunpack.c.h.b16 %v46
    %v136 = vunpack.c.l.b16 %v47
    %v137 = vunpack.c.h.b16 %v47
    %v138 = vunpack.c.l.b16 %v48
    %v139 = vunpack.c.h.b16 %v48
    %v140 = vunpack.c.l.b16 %v49
    %v141 = vunpack.c.h.b16 %v49
    %v142 = vunpack.c.l.b16 %v50
    %v143 = vunpack.c.h.b16 %v50
    %v144 = vunpack.c.l.b16 %v51
    %v145 = vunpack.c.h.b16 %v51
    %v146 = vunpack.c.l.b16 %v52
    %v147 = vunpack.c.h.b16 %v52
    %v148 = vunpack.c.l.b16 %v53
    %v149 = vunpack.c.h.b16 %v53
    %v150 = vunpack.c.l.b16 %v54
    %v151 = vunpack.c.h.b16 %v54
    %v152 = vunpack.c.l.b16 %v55
    %v153 = vunpack.c.h.b16 %v55
    %v154 = vunpack.c.l.b16 %v56
    %v155 = vunpack.c.h.b16 %v56
    %v156 = vunpack.c.l.b16 %v57
    %v157 = vunpack.c.h.b16 %v57
    %v158 = vunpack.c.l.b16 %v58
    %v159 = vunpack.c.h.b16 %v58
    %v160 = vunpack.c.l.b16 %v59
    %v161 = vunpack.c.h.b16 %v59
    %v162 = vunpack.c.l.b16 %v60
    %v163 = vunpack.c.h.b16 %v60
    %v164 = vunpack.c.l.b16 %v61
    %v165 = vunpack.c.h.b16 %v61
    %v166 = vunpack.c.l.b16 %v62
    %v167 = vunpack.c.h.b16 %v62
    %v168 = vunpack.c.l.b16 %v63
    %v169 = vunpack.c.h.b16 %v63
    %v170 = vunpack.c.l.b16 %v64
    %v171 = vunpack.c.h.b16 %v64
    %v172 = vunpack.c.l.b16 %v65
    %v173 = vunpack.c.h.b16 %v65
    %v174 = vunpack.c.l.b16 %v66
    %v175 = vunpack.c.h.b16 %v66
    %v176 = vunpack.c.l.b16 %v67
    %v177 = vunpack.c.h.b16 %v67
    %v178 = vunpack.c.l.b16 %v68
    %v179 = vunpack.c.h.b16 %v68
    %v180 = vunpack.c.l.b16 %v69
    %v181 = vunpack.c.h.b16 %v69
    %v182 = vunpack.c.l.b16 %v70
    %v183 = vunpack.c.h.b16 %v70
    %v184 = vunpack.c.l.b16 %v71
    %v185 = vunpack.c.h.b16 %v71
    %v186 = vunpack.c.l.b16 %v72
    %v187 = vunpack.c.h.b16 %v72
    %v188 = vunpack.c.l.b16 %v73
    %v189 = vunpack.c.h.b16 %v73
    %v190 = vunpack.c.l.b16 %v74
    %v191 = vunpack.c.h.b16 %v74
    %v192 = vunpack.c.l.b16 %v75
    %v193 = vunpack.c.h.b16 %v75
    %v194 = vpack.c.b16 %v134, %v130
    %v195 = vpack.c.b16 %v135, %v131
    %v196 = vpack.c.b16 %v136, %v132
    %v197 = vpack.c.b16 %v137, %v133
    %v198 = vpack.c.b16 %v142, %v138
    %v199 = vpack.c.b16 %v143, %v139
    %v200 = vpack.c.b16 %v144, %v140
    %v201 = vpack.c.b16 %v145, %v141
    %v202 = vpack.c.b16 %v150, %v146
    %v203 = vpack.c.b16 %v151, %v147
    %v204 = vpack.c.b16 %v152, %v148
    %v205 = vpack.c.b16 %v153, %v149
    %v206 = vpack.c.b16 %v158, %v154
    %v207 = vpack.c.b16 %v159, %v155
    %v208 = vpack.c.b16 %v160, %v156
    %v209 = vpack.c.b16 %v161, %v157
    %v210 = vpack.c.b16 %v166, %v162
    %v211 = vpack.c.b16 %v167, %v163
    %v212 = vpack.c.b16 %v168, %v164
    %v213 = vpack.c.b16 %v169, %v165
    %v214 = vpack.c.b16 %v174, %v170
    %v215 = vpack.c.b16 %v175, %v171
    %v216 = vpack.c.b16 %v176, %v172
    %v217 = vpack.c.b16 %v177, %v173
    %v218 = vpack.c.b16 %v182, %v178
    %v219 = vpack.c.b16 %v183, %v179
    %v220 = vpack.c.b16 %v184, %v180
    %v221 = vpack.c.b16 %v185, %v181
    %v222 = vpack.c.b16 %v190, %v186
    %v223 = vpack.c.b16 %v191, %v187
    %v224 = vpack.c.b16 %v192, %v188
    %v225 = vpack.c.b16 %v193, %v189
    %258 = vmatprep.subr.bf16.mxu0 %v223
    %259 = vmatpush1.bf16.msra.mxu0 %v222
    %260 = vmatprep.subr.bf16.mxu0 %v219
    %261 = vmatpush1.bf16.msra.mxu0 %v218
    %262 = vmatprep.subr.bf16.mxu0 %v215
    %263 = vmatpush1.bf16.msra.mxu0 %v214
    %264 = vmatprep.subr.bf16.mxu0 %v211
    %265 = vmatpush1.bf16.msra.mxu0 %v210
    %266 = vmatprep.subr.bf16.mxu0 %v207
    %267 = vmatpush1.bf16.msra.mxu0 %v206
    %268 = vmatprep.subr.bf16.mxu0 %v203
    %269 = vmatpush1.bf16.msra.mxu0 %v202
    %270 = vmatprep.subr.bf16.mxu0 %v199
    %271 = vmatpush1.bf16.msra.mxu0 %v198
    %272 = vmatprep.subr.bf16.mxu0 %v195
    %273 = vmatpush1.bf16.msra.mxu0 %v194
    %274 = vmatprep.subr.bf16.mxu0 0
    %275 = vmatpush2.bf16.msra.mxu0 0
    %276 = vmatprep.subr.bf16.mxu0 0
    %277 = vmatpush2.bf16.msra.mxu0 0
    %278 = vmatprep.subr.bf16.mxu0 0
    %279 = vmatpush2.bf16.msra.mxu0 0
    %280 = vmatprep.subr.bf16.mxu0 0
    %281 = vmatpush2.bf16.msra.mxu0 0
    %282 = vmatprep.subr.bf16.mxu0 0
    %283 = vmatpush2.bf16.msra.mxu0 0
    %284 = vmatprep.subr.bf16.mxu0 0
    %285 = vmatpush2.bf16.msra.mxu0 0
    %286 = vmatprep.subr.bf16.mxu0 0
    %287 = vmatpush2.bf16.msra.mxu0 0
    %288 = vmatprep.subr.bf16.mxu0 0
    %289 = vmatpush2.bf16.msra.mxu0 0
    %290 = vmatprep.mubr.bf16.mxu0 0
    %291 = vmatmul.mubr.bf16.gmra.mxu0 %v40
    %v292 = vpop.f32.mrf.mxu0
    %v293 = vadd.f32 %v81, %v292
    %v294 = vpop.f32.mrf.mxu0
    %v295 = vadd.f32 %v85, %v294
    %v296 = vpop.f32.mrf.mxu0
    %v297 = vadd.f32 %v81, %v296
    %v298 = vpop.f32.mrf.mxu0
    %v299 = vadd.f32 %v85, %v298
    %300 = vmatprep.mubr.bf16.mxu0 0
    %301 = vmatmul.mubr.bf16.gmra.mxu0 %v41
    %v302 = vpop.f32.mrf.mxu0
    %v303 = vadd.f32 %v81, %v302
    %v304 = vpop.f32.mrf.mxu0
    %v305 = vadd.f32 %v85, %v304
    %v306 = vpop.f32.mrf.mxu0
    %v307 = vadd.f32 %v81, %v306
    %v308 = vpop.f32.mrf.mxu0
    %v309 = vadd.f32 %v85, %v308
    %310 = vmatprep.mubr.bf16.mxu0 0
    %311 = vmatmul.mubr.bf16.gmra.mxu0 %v42
    %v312 = vpop.f32.mrf.mxu0
    %v313 = vadd.f32 %v81, %v312
    %v314 = vpop.f32.mrf.mxu0
    %v315 = vadd.f32 %v85, %v314
    %v316 = vpop.f32.mrf.mxu0
    %v317 = vadd.f32 %v81, %v316
    %v318 = vpop.f32.mrf.mxu0
    %v319 = vadd.f32 %v85, %v318
    %320 = vmatprep.mubr.bf16.mxu0 0
    %321 = vmatmul.mubr.bf16.gmra.mxu0 %v43
    %v322 = vpop.f32.mrf.mxu0
    %v323 = vadd.f32 %v81, %v322
    %v324 = vpop.f32.mrf.mxu0
    %v325 = vadd.f32 %v85, %v324
    %v326 = vpop.f32.mrf.mxu0
    %v327 = vadd.f32 %v81, %v326
    %v328 = vpop.f32.mrf.mxu0
    %v329 = vadd.f32 %v85, %v328
    %330 = vdwg.mxu0
    %331 = vmatprep.subr.bf16.mxu0 %v225
    %332 = vmatpush1.bf16.msra.mxu0 %v224
    %333 = vmatprep.subr.bf16.mxu0 %v221
    %334 = vmatpush1.bf16.msra.mxu0 %v220
    %335 = vmatprep.subr.bf16.mxu0 %v217
    %336 = vmatpush1.bf16.msra.mxu0 %v216
    %337 = vmatprep.subr.bf16.mxu0 %v213
    %338 = vmatpush1.bf16.msra.mxu0 %v212
    %339 = vmatprep.subr.bf16.mxu0 %v209
    %340 = vmatpush1.bf16.msra.mxu0 %v208
    %341 = vmatprep.subr.bf16.mxu0 %v205
    %342 = vmatpush1.bf16.msra.mxu0 %v204
    %343 = vmatprep.subr.bf16.mxu0 %v201
    %344 = vmatpush1.bf16.msra.mxu0 %v200
    %345 = vmatprep.subr.bf16.mxu0 %v197
    %346 = vmatpush1.bf16.msra.mxu0 %v196
    %347 = vmatprep.subr.bf16.mxu0 0
    %348 = vmatpush2.bf16.msra.mxu0 0
    %349 = vmatprep.subr.bf16.mxu0 0
    %350 = vmatpush2.bf16.msra.mxu0 0
    %351 = vmatprep.subr.bf16.mxu0 0
    %352 = vmatpush2.bf16.msra.mxu0 0
    %353 = vmatprep.subr.bf16.mxu0 0
    %354 = vmatpush2.bf16.msra.mxu0 0
    %355 = vmatprep.subr.bf16.mxu0 0
    %356 = vmatpush2.bf16.msra.mxu0 0
    %357 = vmatprep.subr.bf16.mxu0 0
    %358 = vmatpush2.bf16.msra.mxu0 0
    %359 = vmatprep.subr.bf16.mxu0 0
    %360 = vmatpush2.bf16.msra.mxu0 0
    %361 = vmatprep.subr.bf16.mxu0 0
    %362 = vmatpush2.bf16.msra.mxu0 0
    %363 = vmatprep.mubr.bf16.mxu0 0
    %364 = vmatmul.mubr.bf16.gmra.mxu0 %v40
    %v365 = vpop.f32.mrf.mxu0
    %v366 = vadd.f32 %v89, %v365
    %v367 = vpop.f32.mrf.mxu0
    %v368 = vadd.f32 %v93, %v367
    %v369 = vpop.f32.mrf.mxu0
    %v370 = vadd.f32 %v89, %v369
    %v371 = vpop.f32.mrf.mxu0
    %v372 = vadd.f32 %v93, %v371
    %373 = vmatprep.mubr.bf16.mxu0 0
    %374 = vmatmul.mubr.bf16.gmra.mxu0 %v41
    %v375 = vpop.f32.mrf.mxu0
    %v376 = vadd.f32 %v89, %v375
    %v377 = vpop.f32.mrf.mxu0
    %v378 = vadd.f32 %v93, %v377
    %v379 = vpop.f32.mrf.mxu0
    %v380 = vadd.f32 %v89, %v379
    %v381 = vpop.f32.mrf.mxu0
    %v382 = vadd.f32 %v93, %v381
    %383 = vmatprep.mubr.bf16.mxu0 0
    %384 = vmatmul.mubr.bf16.gmra.mxu0 %v42
    %v385 = vpop.f32.mrf.mxu0
    %v386 = vadd.f32 %v89, %v385
    %v387 = vpop.f32.mrf.mxu0
    %v388 = vadd.f32 %v93, %v387
    %v389 = vpop.f32.mrf.mxu0
    %v390 = vadd.f32 %v89, %v389
    %v391 = vpop.f32.mrf.mxu0
    %v392 = vadd.f32 %v93, %v391
    %393 = vmatprep.mubr.bf16.mxu0 0
    %394 = vmatmul.mubr.bf16.gmra.mxu0 %v43
    %v395 = vpop.f32.mrf.mxu0
    %v396 = vadd.f32 %v89, %v395
    %v397 = vpop.f32.mrf.mxu0
    %v398 = vadd.f32 %v93, %v397
    %v399 = vpop.f32.mrf.mxu0
    %v400 = vadd.f32 %v89, %v399
    %v401 = vpop.f32.mrf.mxu0
    %v402 = vadd.f32 %v93, %v401
    %403 = vdwg.mxu0
    %404 = vst [vmem:[#allocation2] sm:$0xff] %v293
    %405 = vst [vmem:[#allocation2 + $0x8] sm:$0xff] %v295
    %406 = vst [vmem:[#allocation2 + $0x10] sm:$0xff] %v366
    %407 = vst [vmem:[#allocation2 + $0x18] sm:$0xff] %v368
    %408 = vst [vmem:[#allocation2 + $0x20] sm:$0xff] %v297
    %409 = vst [vmem:[#allocation2 + $0x28] sm:$0xff] %v299
    %410 = vst [vmem:[#allocation2 + $0x30] sm:$0xff] %v370
    %411 = vst [vmem:[#allocation2 + $0x38] sm:$0xff] %v372
    %412 = vst [vmem:[#allocation2 + $0x40] sm:$0xff] %v303
    %413 = vst [vmem:[#allocation2 + $0x48] sm:$0xff] %v305
    %414 = vst [vmem:[#allocation2 + $0x50] sm:$0xff] %v376
    %415 = vst [vmem:[#allocation2 + $0x58] sm:$0xff] %v378
    %416 = vst [vmem:[#allocation2 + $0x60] sm:$0xff] %v307
    %417 = vst [vmem:[#allocation2 + $0x68] sm:$0xff] %v309
    %418 = vst [vmem:[#allocation2 + $0x70] sm:$0xff] %v380
    %419 = vst [vmem:[#allocation2 + $0x78] sm:$0xff] %v382
    %420 = vst [vmem:[#allocation2 + $0x80] sm:$0xff] %v313
    %421 = vst [vmem:[#allocation2 + $0x88] sm:$0xff] %v315
    %422 = vst [vmem:[#allocation2 + $0x90] sm:$0xff] %v386
    %423 = vst [vmem:[#allocation2 + $0x98] sm:$0xff] %v388
    %424 = vst [vmem:[#allocation2 + $0xa0] sm:$0xff] %v317
    %425 = vst [vmem:[#allocation2 + $0xa8] sm:$0xff] %v319
    %426 = vst [vmem:[#allocation2 + $0xb0] sm:$0xff] %v390
    %427 = vst [vmem:[#allocation2 + $0xb8] sm:$0xff] %v392
    %428 = vst [vmem:[#allocation2 + $0xc0] sm:$0xff] %v323
    %429 = vst [vmem:[#allocation2 + $0xc8] sm:$0xff] %v325
    %430 = vst [vmem:[#allocation2 + $0xd0] sm:$0xff] %v396
    %431 = vst [vmem:[#allocation2 + $0xd8] sm:$0xff] %v398
    %432 = vst [vmem:[#allocation2 + $0xe0] sm:$0xff] %v327
    %433 = vst [vmem:[#allocation2 + $0xe8] sm:$0xff] %v329
    %434 = vst [vmem:[#allocation2 + $0xf0] sm:$0xff] %v400
    %435 = vst [vmem:[#allocation2 + $0xf8] sm:$0xff] %v402
    %v436 = vld [vmem:[#allocation3] sm:$0xff]
    %v437 = vld [vmem:[#allocation3 + $0x8] sm:$0xff]
    %v438 = vld [vmem:[#allocation3 + $0x10] sm:$0xff]
    %v439 = vld [vmem:[#allocation3 + $0x18] sm:$0xff]
    %v440 = vld [vmem:[#allocation3 + $0x20] sm:$0xff]
    %v441 = vld [vmem:[#allocation3 + $0x28] sm:$0xff]
    %v442 = vld [vmem:[#allocation3 + $0x30] sm:$0xff]
    %v443 = vld [vmem:[#allocation3 + $0x38] sm:$0xff]
    %v444 = vld [vmem:[#allocation3 + $0x40] sm:$0xff]
    %v445 = vld [vmem:[#allocation3 + $0x48] sm:$0xff]
    %v446 = vld [vmem:[#allocation3 + $0x50] sm:$0xff]
    %v447 = vld [vmem:[#allocation3 + $0x58] sm:$0xff]
    %v448 = vld [vmem:[#allocation3 + $0x60] sm:$0xff]
    %v449 = vld [vmem:[#allocation3 + $0x68] sm:$0xff]
    %v450 = vld [vmem:[#allocation3 + $0x70] sm:$0xff]
    %v451 = vld [vmem:[#allocation3 + $0x78] sm:$0xff]
    %v452 = vld [vmem:[#allocation3 + $0x80] sm:$0xff]
    %v453 = vld [vmem:[#allocation3 + $0x88] sm:$0xff]
    %v454 = vld [vmem:[#allocation3 + $0x90] sm:$0xff]
    %v455 = vld [vmem:[#allocation3 + $0x98] sm:$0xff]
    %v456 = vld [vmem:[#allocation3 + $0xa0] sm:$0xff]
    %v457 = vld [vmem:[#allocation3 + $0xa8] sm:$0xff]
    %v458 = vld [vmem:[#allocation3 + $0xb0] sm:$0xff]
    %v459 = vld [vmem:[#allocation3 + $0xb8] sm:$0xff]
    %v460 = vld [vmem:[#allocation3 + $0xc0] sm:$0xff]
    %v461 = vld [vmem:[#allocation3 + $0xc8] sm:$0xff]
    %v462 = vld [vmem:[#allocation3 + $0xd0] sm:$0xff]
    %v463 = vld [vmem:[#allocation3 + $0xd8] sm:$0xff]
    %v464 = vld [vmem:[#allocation3 + $0xe0] sm:$0xff]
    %v465 = vld [vmem:[#allocation3 + $0xe8] sm:$0xff]
    %v466 = vld [vmem:[#allocation3 + $0xf0] sm:$0xff]
    %v467 = vld [vmem:[#allocation3 + $0xf8] sm:$0xff]
    %v468 = vld [vmem:[#allocation2] sm:$0xff]
    %v469 = vld [vmem:[#allocation2 + $0x8] sm:$0xff]
    %v470 = vld [vmem:[#allocation2 + $0x10] sm:$0xff]
    %v471 = vld [vmem:[#allocation2 + $0x18] sm:$0xff]
    %v472 = vxor.u32 %v468, 2147483648
    %v473 = vxor.u32 %v469, 2147483648
    %v474 = vxor.u32 %v470, 2147483648
    %v475 = vmul.f32 %v472, 1.442695
    %v476 = vpow.pop %v475
    %v477 = vmul.f32 %v473, 1.442695
    %v478 = vpow.pop %v477
    %v479 = vmul.f32 %v474, 1.442695
    %v480 = vpow.pop %v479
    %v481 = vadd.f32 %v476, 1.0
    %v482 = vadd.f32 %v478, 1.0
    %v483 = vadd.f32 %v480, 1.0
    %v484 = vrcp.pop %v481
    %v485 = vmul.f32 1.0, %v484
    %v486 = vrcp.pop %v482
    %v487 = vmul.f32 1.0, %v486
    %v488 = vrcp.pop %v483
    %v489 = vmul.f32 1.0, %v488
    %v490 = vtanh.pop %v471
    %v491 = vmul.f32 %v487, 0.0
    %v492 = vmul.f32 %v485, %v490
    %v493 = vadd.f32 %v491, %v492
    %v494 = vtanh.pop %v493
    %v495 = vmul.f32 %v489, %v494
    %v496 = vpack.c.bf16 %v495, %v495
    %497 = vst [vmem:[%s4] sm:$0xff] %v495
    %v498 = vld [vmem:[#allocation2 + $0x20] sm:$0xff]
    %v499 = vld [vmem:[#allocation2 + $0x28] sm:$0xff]
    %v500 = vld [vmem:[#allocation2 + $0x30] sm:$0xff]
    %v501 = vld [vmem:[#allocation2 + $0x38] sm:$0xff]
    %v534 = vunpack.c.l.b16 %v436
    %v535 = vunpack.c.h.b16 %v436
    %v536 = vunpack.c.l.b16 %v437
    %v537 = vunpack.c.h.b16 %v437
    %v538 = vunpack.c.l.b16 %v438
    %v539 = vunpack.c.h.b16 %v438
    %v540 = vunpack.c.l.b16 %v439
    %v541 = vunpack.c.h.b16 %v439
    %v542 = vunpack.c.l.b16 %v440
    %v543 = vunpack.c.h.b16 %v440
    %v544 = vunpack.c.l.b16 %v441
    %v545 = vunpack.c.h.b16 %v441
    %v546 = vunpack.c.l.b16 %v442
    %v547 = vunpack.c.h.b16 %v442
    %v548 = vunpack.c.l.b16 %v443
    %v549 = vunpack.c.h.b16 %v443
    %v550 = vunpack.c.l.b16 %v444
    %v551 = vunpack.c.h.b16 %v444
    %v552 = vunpack.c.l.b16 %v445
    %v553 = vunpack.c.h.b16 %v445
    %v554 = vunpack.c.l.b16 %v446
    %v555 = vunpack.c.h.b16 %v446
    %v556 = vunpack.c.l.b16 %v447
    %v557 = vunpack.c.h.b16 %v447
    %v558 = vunpack.c.l.b16 %v448
    %v559 = vunpack.c.h.b16 %v448
    %v560 = vunpack.c.l.b16 %v449
    %v561 = vunpack.c.h.b16 %v449
    %v562 = vunpack.c.l.b16 %v450
    %v563 = vunpack.c.h.b16 %v450
    %v564 = vunpack.c.l.b16 %v451
    %v565 = vunpack.c.h.b16 %v451
    %v566 = vunpack.c.l.b16 %v452
    %v567 = vunpack.c.h.b16 %v452
    %v568 = vunpack.c.l.b16 %v453
    %v569 = vunpack.c.h.b16 %v453
    %v570 = vunpack.c.l.b16 %v454
    %v571 = vunpack.c.h.b16 %v454
    %v572 = vunpack.c.l.b16 %v455
    %v573 = vunpack.c.h.b16 %v455
    %v574 = vunpack.c.l.b16 %v456
    %v575 = vunpack.c.h.b16 %v456
    %v576 = vunpack.c.l.b16 %v457
    %v577 = vunpack.c.h.b16 %v457
    %v578 = vunpack.c.l.b16 %v458
    %v579 = vunpack.c.h.b16 %v458
    %v580 = vunpack.c.l.b16 %v459
    %v581 = vunpack.c.h.b16 %v459
    %v582 = vunpack.c.l.b16 %v460
    %v583 = vunpack.c.h.b16 %v460
    %v584 = vunpack.c.l.b16 %v461
    %v585 = vunpack.c.h.b16 %v461
    %v586 = vunpack.c.l.b16 %v462
    %v587 = vunpack.c.h.b16 %v462
    %v588 = vunpack.c.l.b16 %v463
    %v589 = vunpack.c.h.b16 %v463
    %v590 = vunpack.c.l.b16 %v464
    %v591 = vunpack.c.h.b16 %v464
    %v592 = vunpack.c.l.b16 %v465
    %v593 = vunpack.c.h.b16 %v465
    %v594 = vunpack.c.l.b16 %v466
    %v595 = vunpack.c.h.b16 %v466
    %v596 = vunpack.c.l.b16 %v467
    %v597 = vunpack.c.h.b16 %v467
    %v598 = vpack.c.b16 %v538, %v534
    %v599 = vpack.c.b16 %v539, %v535
    %v600 = vpack.c.b16 %v540, %v536
    %v601 = vpack.c.b16 %v541, %v537
    %v602 = vpack.c.b16 %v546, %v542
    %v603 = vpack.c.b16 %v547, %v543
    %v604 = vpack.c.b16 %v548, %v544
    %v605 = vpack.c.b16 %v549, %v545
    %v606 = vpack.c.b16 %v554, %v550
    %v607 = vpack.c.b16 %v555, %v551
    %v608 = vpack.c.b16 %v556, %v552
    %v609 = vpack.c.b16 %v557, %v553
    %v610 = vpack.c.b16 %v562, %v558
    %v611 = vpack.c.b16 %v563, %v559
    %v612 = vpack.c.b16 %v564, %v560
    %v613 = vpack.c.b16 %v565, %v561
    %v614 = vpack.c.b16 %v570, %v566
    %v615 = vpack.c.b16 %v571, %v567
    %v616 = vpack.c.b16 %v572, %v568
    %v617 = vpack.c.b16 %v573, %v569
    %v618 = vpack.c.b16 %v578, %v574
    %v619 = vpack.c.b16 %v579, %v575
    %v620 = vpack.c.b16 %v580, %v576
    %v621 = vpack.c.b16 %v581, %v577
    %v622 = vpack.c.b16 %v586, %v582
    %v623 = vpack.c.b16 %v587, %v583
    %v624 = vpack.c.b16 %v588, %v584
    %v625 = vpack.c.b16 %v589, %v585
    %v626 = vpack.c.b16 %v594, %v590
    %v627 = vpack.c.b16 %v595, %v591
    %v628 = vpack.c.b16 %v596, %v592
    %v629 = vpack.c.b16 %v597, %v593
    %662 = vmatprep.subr.bf16.mxu0 %v627
    %663 = vmatpush1.bf16.msra.mxu0 %v626
    %664 = vmatprep.subr.bf16.mxu0 %v623
    %665 = vmatpush1.bf16.msra.mxu0 %v622
    %666 = vmatprep.subr.bf16.mxu0 %v619
    %667 = vmatpush1.bf16.msra.mxu0 %v618
    %668 = vmatprep.subr.bf16.mxu0 %v615
    %669 = vmatpush1.bf16.msra.mxu0 %v614
    %670 = vmatprep.subr.bf16.mxu0 %v611
    %671 = vmatpush1.bf16.msra.mxu0 %v610
    %672 = vmatprep.subr.bf16.mxu0 %v607
    %673 = vmatpush1.bf16.msra.mxu0 %v606
    %674 = vmatprep.subr.bf16.mxu0 %v603
    %675 = vmatpush1.bf16.msra.mxu0 %v602
    %676 = vmatprep.subr.bf16.mxu0 %v599
    %677 = vmatpush1.bf16.msra.mxu0 %v598
    %678 = vmatprep.subr.bf16.mxu0 0
    %679 = vmatpush2.bf16.msra.mxu0 0
    %680 = vmatprep.subr.bf16.mxu0 0
    %681 = vmatpush2.bf16.msra.mxu0 0
    %682 = vmatprep.subr.bf16.mxu0 0
    %683 = vmatpush2.bf16.msra.mxu0 0
    %684 = vmatprep.subr.bf16.mxu0 0
    %685 = vmatpush2.bf16.msra.mxu0 0
    %686 = vmatprep.subr.bf16.mxu0 0
    %687 = vmatpush2.bf16.msra.mxu0 0
    %688 = vmatprep.subr.bf16.mxu0 0
    %689 = vmatpush2.bf16.msra.mxu0 0
    %690 = vmatprep.subr.bf16.mxu0 0
    %691 = vmatpush2.bf16.msra.mxu0 0
    %692 = vmatprep.subr.bf16.mxu0 0
    %693 = vmatpush2.bf16.msra.mxu0 0
    %694 = vmatprep.mubr.bf16.mxu0 0
    %695 = vmatmul.mubr.bf16.gmra.mxu0 %v496
    %v696 = vpop.f32.mrf.mxu0
    %v697 = vadd.f32 0.0, %v696
    %v698 = vpop.f32.mrf.mxu0
    %v699 = vadd.f32 0.0, %v698
    %v700 = vpop.f32.mrf.mxu0
    %v701 = vpop.f32.mrf.mxu0
    %702 = vdwg.mxu0
    %703 = vmatprep.subr.bf16.mxu0 %v629
    %704 = vmatpush1.bf16.msra.mxu0 %v628
    %705 = vmatprep.subr.bf16.mxu0 %v625
    %706 = vmatpush1.bf16.msra.mxu0 %v624
    %707 = vmatprep.subr.bf16.mxu0 %v621
    %708 = vmatpush1.bf16.msra.mxu0 %v620
    %709 = vmatprep.subr.bf16.mxu0 %v617
    %710 = vmatpush1.bf16.msra.mxu0 %v616
    %711 = vmatprep.subr.bf16.mxu0 %v613
    %712 = vmatpush1.bf16.msra.mxu0 %v612
    %713 = vmatprep.subr.bf16.mxu0 %v609
    %714 = vmatpush1.bf16.msra.mxu0 %v608
    %715 = vmatprep.subr.bf16.mxu0 %v605
    %716 = vmatpush1.bf16.msra.mxu0 %v604
    %717 = vmatprep.subr.bf16.mxu0 %v601
    %718 = vmatpush1.bf16.msra.mxu0 %v600
    %719 = vmatprep.subr.bf16.mxu0 0
    %720 = vmatpush2.bf16.msra.mxu0 0
    %721 = vmatprep.subr.bf16.mxu0 0
    %722 = vmatpush2.bf16.msra.mxu0 0
    %723 = vmatprep.subr.bf16.mxu0 0
    %724 = vmatpush2.bf16.msra.mxu0 0
    %725 = vmatprep.subr.bf16.mxu0 0
    %726 = vmatpush2.bf16.msra.mxu0 0
    %727 = vmatprep.subr.bf16.mxu0 0
    %728 = vmatpush2.bf16.msra.mxu0 0
    %729 = vmatprep.subr.bf16.mxu0 0
    %730 = vmatpush2.bf16.msra.mxu0 0
    %731 = vmatprep.subr.bf16.mxu0 0
    %732 = vmatpush2.bf16.msra.mxu0 0
    %733 = vmatprep.subr.bf16.mxu0 0
    %734 = vmatpush2.bf16.msra.mxu0 0
    %735 = vmatprep.mubr.bf16.mxu0 0
    %736 = vmatmul.mubr.bf16.gmra.mxu0 %v496
    %v737 = vpop.f32.mrf.mxu0
    %v738 = vadd.f32 0.0, %v737
    %v739 = vpop.f32.mrf.mxu0
    %v740 = vadd.f32 0.0, %v739
    %v741 = vpop.f32.mrf.mxu0
    %v742 = vpop.f32.mrf.mxu0
    %743 = vdwg.mxu0
    %v744 = vadd.f32 %v498, %v697
    %v745 = vadd.f32 %v499, %v699
    %v746 = vadd.f32 %v500, %v738
    %v747 = vadd.f32 %v501, %v740
    %v748 = vxor.u32 %v744, 2147483648
    %v749 = vxor.u32 %v745, 2147483648
    %v750 = vxor.u32 %v746, 2147483648
    %v751 = vmul.f32 %v748, 1.442695
    %v752 = vpow.pop %v751
    %v753 = vmul.f32 %v749, 1.442695
    %v754 = vpow.pop %v753
    %v755 = vmul.f32 %v750, 1.442695
    %v756 = vpow.pop %v755
    %v757 = vadd.f32 %v752, 1.0
    %v758 = vadd.f32 %v754, 1.0
    %v759 = vadd.f32 %v756, 1.0
    %v760 = vrcp.pop %v757
    %v761 = vmul.f32 1.0, %v760
    %v762 = vrcp.pop %v758
    %v763 = vmul.f32 1.0, %v762
    %v764 = vrcp.pop %v759
    %v765 = vmul.f32 1.0, %v764
    %v766 = vtanh.pop %v747
    %v767 = vmul.f32 %v763, %v493
    %v768 = vmul.f32 %v761, %v766
    %v769 = vadd.f32 %v767, %v768
    %v770 = vtanh.pop %v769
    %v771 = vmul.f32 %v765, %v770
    %v772 = vpack.c.bf16 %v771, %v771
    %773 = vst [vmem:[%s4 + $0x8] sm:$0xff] %v771
    %v774 = vld [vmem:[#allocation2 + $0x40] sm:$0xff]
    %v775 = vld [vmem:[#allocation2 + $0x48] sm:$0xff]
    %v776 = vld [vmem:[#allocation2 + $0x50] sm:$0xff]
    %v777 = vld [vmem:[#allocation2 + $0x58] sm:$0xff]
    %778 = vmatprep.subr.bf16.mxu0 %v627
    %779 = vmatpush1.bf16.msra.mxu0 %v626
    %780 = vmatprep.subr.bf16.mxu0 %v623
    %781 = vmatpush1.bf16.msra.mxu0 %v622
    %782 = vmatprep.subr.bf16.mxu0 %v619
    %783 = vmatpush1.bf16.msra.mxu0 %v618
    %784 = vmatprep.subr.bf16.mxu0 %v615
    %785 = vmatpush1.bf16.msra.mxu0 %v614
    %786 = vmatprep.subr.bf16.mxu0 %v611
    %787 = vmatpush1.bf16.msra.mxu0 %v610
    %788 = vmatprep.subr.bf16.mxu0 %v607
    %789 = vmatpush1.bf16.msra.mxu0 %v606
    %790 = vmatprep.subr.bf16.mxu0 %v603
    %791 = vmatpush1.bf16.msra.mxu0 %v602
    %792 = vmatprep.subr.bf16.mxu0 %v599
    %793 = vmatpush1.bf16.msra.mxu0 %v598
    %794 = vmatprep.subr.bf16.mxu0 0
    %795 = vmatpush2.bf16.msra.mxu0 0
    %796 = vmatprep.subr.bf16.mxu0 0
    %797 = vmatpush2.bf16.msra.mxu0 0
    %798 = vmatprep.subr.bf16.mxu0 0
    %799 = vmatpush2.bf16.msra.mxu0 0
    %800 = vmatprep.subr.bf16.mxu0 0
    %801 = vmatpush2.bf16.msra.mxu0 0
    %802 = vmatprep.subr.bf16.mxu0 0
    %803 = vmatpush2.bf16.msra.mxu0 0
    %804 = vmatprep.subr.bf16.mxu0 0
    %805 = vmatpush2.bf16.msra.mxu0 0
    %806 = vmatprep.subr.bf16.mxu0 0
    %807 = vmatpush2.bf16.msra.mxu0 0
    %808 = vmatprep.subr.bf16.mxu0 0
    %809 = vmatpush2.bf16.msra.mxu0 0
    %810 = vmatprep.mubr.bf16.mxu0 0
    %811 = vmatmul.mubr.bf16.gmra.mxu0 %v772
    %v812 = vpop.f32.mrf.mxu0
    %v813 = vadd.f32 0.0, %v812
    %v814 = vpop.f32.mrf.mxu0
    %v815 = vadd.f32 0.0, %v814
    %v816 = vpop.f32.mrf.mxu0
    %v817 = vpop.f32.mrf.mxu0
    %818 = vdwg.mxu0
    %819 = vmatprep.subr.bf16.mxu0 %v629
    %820 = vmatpush1.bf16.msra.mxu0 %v628
    %821 = vmatprep.subr.bf16.mxu0 %v625
    %822 = vmatpush1.bf16.msra.mxu0 %v624
    %823 = vmatprep.subr.bf16.mxu0 %v621
    %824 = vmatpush1.bf16.msra.mxu0 %v620
    %825 = vmatprep.subr.bf16.mxu0 %v617
    %826 = vmatpush1.bf16.msra.mxu0 %v616
    %827 = vmatprep.subr.bf16.mxu0 %v613
    %828 = vmatpush1.bf16.msra.mxu0 %v612
    %829 = vmatprep.subr.bf16.mxu0 %v609
    %830 = vmatpush1.bf16.msra.mxu0 %v608
    %831 = vmatprep.subr.bf16.mxu0 %v605
    %832 = vmatpush1.bf16.msra.mxu0 %v604
    %833 = vmatprep.subr.bf16.mxu0 %v601
    %834 = vmatpush1.bf16.msra.mxu0 %v600
    %835 = vmatprep.subr.bf16.mxu0 0
    %836 = vmatpush2.bf16.msra.mxu0 0
    %837 = vmatprep.subr.bf16.mxu0 0
    %838 = vmatpush2.bf16.msra.mxu0 0
    %839 = vmatprep.subr.bf16.mxu0 0
    %840 = vmatpush2.bf16.msra.mxu0 0
    %841 = vmatprep.subr.bf16.mxu0 0
    %842 = vmatpush2.bf16.msra.mxu0 0
    %843 = vmatprep.subr.bf16.mxu0 0
    %844 = vmatpush2.bf16.msra.mxu0 0
    %845 = vmatprep.subr.bf16.mxu0 0
    %846 = vmatpush2.bf16.msra.mxu0 0
    %847 = vmatprep.subr.bf16.mxu0 0
    %848 = vmatpush2.bf16.msra.mxu0 0
    %849 = vmatprep.subr.bf16.mxu0 0
    %850 = vmatpush2.bf16.msra.mxu0 0
    %851 = vmatprep.mubr.bf16.mxu0 0
    %852 = vmatmul.mubr.bf16.gmra.mxu0 %v772
    %v853 = vpop.f32.mrf.mxu0
    %v854 = vadd.f32 0.0, %v853
    %v855 = vpop.f32.mrf.mxu0
    %v856 = vadd.f32 0.0, %v855
    %v857 = vpop.f32.mrf.mxu0
    %v858 = vpop.f32.mrf.mxu0
    %859 = vdwg.mxu0
    %v860 = vadd.f32 %v774, %v813
    %v861 = vadd.f32 %v775, %v815
    %v862 = vadd.f32 %v776, %v854
    %v863 = vadd.f32 %v777, %v856
    %v864 = vxor.u32 %v860, 2147483648
    %v865 = vxor.u32 %v861, 2147483648
    %v866 = vxor.u32 %v862, 2147483648
    %v867 = vmul.f32 %v864, 1.442695
    %v868 = vpow.pop %v867
    %v869 = vmul.f32 %v865, 1.442695
    %v870 = vpow.pop %v869
    %v871 = vmul.f32 %v866, 1.442695
    %v872 = vpow.pop %v871
    %v873 = vadd.f32 %v868, 1.0
    %v874 = vadd.f32 %v870, 1.0
    %v875 = vadd.f32 %v872, 1.0
    %v876 = vrcp.pop %v873
    %v877 = vmul.f32 1.0, %v876
    %v878 = vrcp.pop %v874
    %v879 = vmul.f32 1.0, %v878
    %v880 = vrcp.pop %v875
    %v881 = vmul.f32 1.0, %v880
    %v882 = vtanh.pop %v863
    %v883 = vmul.f32 %v879, %v769
    %v884 = vmul.f32 %v877, %v882
    %v885 = vadd.f32 %v883, %v884
    %v886 = vtanh.pop %v885
    %v887 = vmul.f32 %v881, %v886
    %v888 = vpack.c.bf16 %v887, %v887
    %889 = vst [vmem:[%s4 + $0x10] sm:$0xff] %v887
    %v890 = vld [vmem:[#allocation2 + $0x60] sm:$0xff]
    %v891 = vld [vmem:[#allocation2 + $0x68] sm:$0xff]
    %v892 = vld [vmem:[#allocation2 + $0x70] sm:$0xff]
    %v893 = vld [vmem:[#allocation2 + $0x78] sm:$0xff]
    %894 = vmatprep.subr.bf16.mxu0 %v627
    %895 = vmatpush1.bf16.msra.mxu0 %v626
    %896 = vmatprep.subr.bf16.mxu0 %v623
    %897 = vmatpush1.bf16.msra.mxu0 %v622
    %898 = vmatprep.subr.bf16.mxu0 %v619
    %899 = vmatpush1.bf16.msra.mxu0 %v618
    %900 = vmatprep.subr.bf16.mxu0 %v615
    %901 = vmatpush1.bf16.msra.mxu0 %v614
    %902 = vmatprep.subr.bf16.mxu0 %v611
    %903 = vmatpush1.bf16.msra.mxu0 %v610
    %904 = vmatprep.subr.bf16.mxu0 %v607
    %905 = vmatpush1.bf16.msra.mxu0 %v606
    %906 = vmatprep.subr.bf16.mxu0 %v603
    %907 = vmatpush1.bf16.msra.mxu0 %v602
    %908 = vmatprep.subr.bf16.mxu0 %v599
    %909 = vmatpush1.bf16.msra.mxu0 %v598
    %910 = vmatprep.subr.bf16.mxu0 0
    %911 = vmatpush2.bf16.msra.mxu0 0
    %912 = vmatprep.subr.bf16.mxu0 0
    %913 = vmatpush2.bf16.msra.mxu0 0
    %914 = vmatprep.subr.bf16.mxu0 0
    %915 = vmatpush2.bf16.msra.mxu0 0
    %916 = vmatprep.subr.bf16.mxu0 0
    %917 = vmatpush2.bf16.msra.mxu0 0
    %918 = vmatprep.subr.bf16.mxu0 0
    %919 = vmatpush2.bf16.msra.mxu0 0
    %920 = vmatprep.subr.bf16.mxu0 0
    %921 = vmatpush2.bf16.msra.mxu0 0
    %922 = vmatprep.subr.bf16.mxu0 0
    %923 = vmatpush2.bf16.msra.mxu0 0
    %924 = vmatprep.subr.bf16.mxu0 0
    %925 = vmatpush2.bf16.msra.mxu0 0
    %926 = vmatprep.mubr.bf16.mxu0 0
    %927 = vmatmul.mubr.bf16.gmra.mxu0 %v888
    %v928 = vpop.f32.mrf.mxu0
    %v929 = vadd.f32 0.0, %v928
    %v930 = vpop.f32.mrf.mxu0
    %v931 = vadd.f32 0.0, %v930
    %v932 = vpop.f32.mrf.mxu0
    %v933 = vpop.f32.mrf.mxu0
    %934 = vdwg.mxu0
    %935 = vmatprep.subr.bf16.mxu0 %v629
    %936 = vmatpush1.bf16.msra.mxu0 %v628
    %937 = vmatprep.subr.bf16.mxu0 %v625
    %938 = vmatpush1.bf16.msra.mxu0 %v624
    %939 = vmatprep.subr.bf16.mxu0 %v621
    %940 = vmatpush1.bf16.msra.mxu0 %v620
    %941 = vmatprep.subr.bf16.mxu0 %v617
    %942 = vmatpush1.bf16.msra.mxu0 %v616
    %943 = vmatprep.subr.bf16.mxu0 %v613
    %944 = vmatpush1.bf16.msra.mxu0 %v612
    %945 = vmatprep.subr.bf16.mxu0 %v609
    %946 = vmatpush1.bf16.msra.mxu0 %v608
    %947 = vmatprep.subr.bf16.mxu0 %v605
    %948 = vmatpush1.bf16.msra.mxu0 %v604
    %949 = vmatprep.subr.bf16.mxu0 %v601
    %950 = vmatpush1.bf16.msra.mxu0 %v600
    %951 = vmatprep.subr.bf16.mxu0 0
    %952 = vmatpush2.bf16.msra.mxu0 0
    %953 = vmatprep.subr.bf16.mxu0 0
    %954 = vmatpush2.bf16.msra.mxu0 0
    %955 = vmatprep.subr.bf16.mxu0 0
    %956 = vmatpush2.bf16.msra.mxu0 0
    %957 = vmatprep.subr.bf16.mxu0 0
    %958 = vmatpush2.bf16.msra.mxu0 0
    %959 = vmatprep.subr.bf16.mxu0 0
    %960 = vmatpush2.bf16.msra.mxu0 0
    %961 = vmatprep.subr.bf16.mxu0 0
    %962 = vmatpush2.bf16.msra.mxu0 0
    %963 = vmatprep.subr.bf16.mxu0 0
    %964 = vmatpush2.bf16.msra.mxu0 0
    %965 = vmatprep.subr.bf16.mxu0 0
    %966 = vmatpush2.bf16.msra.mxu0 0
    %967 = vmatprep.mubr.bf16.mxu0 0
    %968 = vmatmul.mubr.bf16.gmra.mxu0 %v888
    %v969 = vpop.f32.mrf.mxu0
    %v970 = vadd.f32 0.0, %v969
    %v971 = vpop.f32.mrf.mxu0
    %v972 = vadd.f32 0.0, %v971
    %v973 = vpop.f32.mrf.mxu0
    %v974 = vpop.f32.mrf.mxu0
    %975 = vdwg.mxu0
    %v976 = vadd.f32 %v890, %v929
    %v977 = vadd.f32 %v891, %v931
    %v978 = vadd.f32 %v892, %v970
    %v979 = vadd.f32 %v893, %v972
    %v980 = vxor.u32 %v976, 2147483648
    %v981 = vxor.u32 %v977, 2147483648
    %v982 = vxor.u32 %v978, 2147483648
    %v983 = vmul.f32 %v980, 1.442695
    %v984 = vpow.pop %v983
    %v985 = vmul.f32 %v981, 1.442695
    %v986 = vpow.pop %v985
    %v987 = vmul.f32 %v982, 1.442695
    %v988 = vpow.pop %v987
    %v989 = vadd.f32 %v984, 1.0
    %v990 = vadd.f32 %v986, 1.0
    %v991 = vadd.f32 %v988, 1.0
    %v992 = vrcp.pop %v989
    %v993 = vmul.f32 1.0, %v992
    %v994 = vrcp.pop %v990
    %v995 = vmul.f32 1.0, %v994
    %v996 = vrcp.pop %v991
    %v997 = vmul.f32 1.0, %v996
    %v998 = vtanh.pop %v979
    %v999 = vmul.f32 %v995, %v885
    %v1000 = vmul.f32 %v993, %v998
    %v1001 = vadd.f32 %v999, %v1000
    %v1002 = vtanh.pop %v1001
    %v1003 = vmul.f32 %v997, %v1002
    %v1004 = vpack.c.bf16 %v1003, %v1003
    %1005 = vst [vmem:[%s4 + $0x18] sm:$0xff] %v1003
    %v1006 = vld [vmem:[#allocation2 + $0x80] sm:$0xff]
    %v1007 = vld [vmem:[#allocation2 + $0x88] sm:$0xff]
    %v1008 = vld [vmem:[#allocation2 + $0x90] sm:$0xff]
    %v1009 = vld [vmem:[#allocation2 + $0x98] sm:$0xff]
    %1010 = vmatprep.subr.bf16.mxu0 %v627
    %1011 = vmatpush1.bf16.msra.mxu0 %v626
    %1012 = vmatprep.subr.bf16.mxu0 %v623
    %1013 = vmatpush1.bf16.msra.mxu0 %v622
    %1014 = vmatprep.subr.bf16.mxu0 %v619
    %1015 = vmatpush1.bf16.msra.mxu0 %v618
    %1016 = vmatprep.subr.bf16.mxu0 %v615
    %1017 = vmatpush1.bf16.msra.mxu0 %v614
    %1018 = vmatprep.subr.bf16.mxu0 %v611
    %1019 = vmatpush1.bf16.msra.mxu0 %v610
    %1020 = vmatprep.subr.bf16.mxu0 %v607
    %1021 = vmatpush1.bf16.msra.mxu0 %v606
    %1022 = vmatprep.subr.bf16.mxu0 %v603
    %1023 = vmatpush1.bf16.msra.mxu0 %v602
    %1024 = vmatprep.subr.bf16.mxu0 %v599
    %1025 = vmatpush1.bf16.msra.mxu0 %v598
    %1026 = vmatprep.subr.bf16.mxu0 0
    %1027 = vmatpush2.bf16.msra.mxu0 0
    %1028 = vmatprep.subr.bf16.mxu0 0
    %1029 = vmatpush2.bf16.msra.mxu0 0
    %1030 = vmatprep.subr.bf16.mxu0 0
    %1031 = vmatpush2.bf16.msra.mxu0 0
    %1032 = vmatprep.subr.bf16.mxu0 0
    %1033 = vmatpush2.bf16.msra.mxu0 0
    %1034 = vmatprep.subr.bf16.mxu0 0
    %1035 = vmatpush2.bf16.msra.mxu0 0
    %1036 = vmatprep.subr.bf16.mxu0 0
    %1037 = vmatpush2.bf16.msra.mxu0 0
    %1038 = vmatprep.subr.bf16.mxu0 0
    %1039 = vmatpush2.bf16.msra.mxu0 0
    %1040 = vmatprep.subr.bf16.mxu0 0
    %1041 = vmatpush2.bf16.msra.mxu0 0
    %1042 = vmatprep.mubr.bf16.mxu0 0
    %1043 = vmatmul.mubr.bf16.gmra.mxu0 %v1004
    %v1044 = vpop.f32.mrf.mxu0
    %v1045 = vadd.f32 0.0, %v1044
    %v1046 = vpop.f32.mrf.mxu0
    %v1047 = vadd.f32 0.0, %v1046
    %v1048 = vpop.f32.mrf.mxu0
    %v1049 = vpop.f32.mrf.mxu0
    %1050 = vdwg.mxu0
    %1051 = vmatprep.subr.bf16.mxu0 %v629
    %1052 = vmatpush1.bf16.msra.mxu0 %v628
    %1053 = vmatprep.subr.bf16.mxu0 %v625
    %1054 = vmatpush1.bf16.msra.mxu0 %v624
    %1055 = vmatprep.subr.bf16.mxu0 %v621
    %1056 = vmatpush1.bf16.msra.mxu0 %v620
    %1057 = vmatprep.subr.bf16.mxu0 %v617
    %1058 = vmatpush1.bf16.msra.mxu0 %v616
    %1059 = vmatprep.subr.bf16.mxu0 %v613
    %1060 = vmatpush1.bf16.msra.mxu0 %v612
    %1061 = vmatprep.subr.bf16.mxu0 %v609
    %1062 = vmatpush1.bf16.msra.mxu0 %v608
    %1063 = vmatprep.subr.bf16.mxu0 %v605
    %1064 = vmatpush1.bf16.msra.mxu0 %v604
    %1065 = vmatprep.subr.bf16.mxu0 %v601
    %1066 = vmatpush1.bf16.msra.mxu0 %v600
    %1067 = vmatprep.subr.bf16.mxu0 0
    %1068 = vmatpush2.bf16.msra.mxu0 0
    %1069 = vmatprep.subr.bf16.mxu0 0
    %1070 = vmatpush2.bf16.msra.mxu0 0
    %1071 = vmatprep.subr.bf16.mxu0 0
    %1072 = vmatpush2.bf16.msra.mxu0 0
    %1073 = vmatprep.subr.bf16.mxu0 0
    %1074 = vmatpush2.bf16.msra.mxu0 0
    %1075 = vmatprep.subr.bf16.mxu0 0
    %1076 = vmatpush2.bf16.msra.mxu0 0
    %1077 = vmatprep.subr.bf16.mxu0 0
    %1078 = vmatpush2.bf16.msra.mxu0 0
    %1079 = vmatprep.subr.bf16.mxu0 0
    %1080 = vmatpush2.bf16.msra.mxu0 0
    %1081 = vmatprep.subr.bf16.mxu0 0
    %1082 = vmatpush2.bf16.msra.mxu0 0
    %1083 = vmatprep.mubr.bf16.mxu0 0
    %1084 = vmatmul.mubr.bf16.gmra.mxu0 %v1004
    %v1085 = vpop.f32.mrf.mxu0
    %v1086 = vadd.f32 0.0, %v1085
    %v1087 = vpop.f32.mrf.mxu0
    %v1088 = vadd.f32 0.0, %v1087
    %v1089 = vpop.f32.mrf.mxu0
    %v1090 = vpop.f32.mrf.mxu0
    %1091 = vdwg.mxu0
    %v1092 = vadd.f32 %v1006, %v1045
    %v1093 = vadd.f32 %v1007, %v1047
    %v1094 = vadd.f32 %v1008, %v1086
    %v1095 = vadd.f32 %v1009, %v1088
    %v1096 = vxor.u32 %v1092, 2147483648
    %v1097 = vxor.u32 %v1093, 2147483648
    %v1098 = vxor.u32 %v1094, 2147483648
    %v1099 = vmul.f32 %v1096, 1.442695
    %v1100 = vpow.pop %v1099
    %v1101 = vmul.f32 %v1097, 1.442695
    %v1102 = vpow.pop %v1101
    %v1103 = vmul.f32 %v1098, 1.442695
    %v1104 = vpow.pop %v1103
    %v1105 = vadd.f32 %v1100, 1.0
    %v1106 = vadd.f32 %v1102, 1.0
    %v1107 = vadd.f32 %v1104, 1.0
    %v1108 = vrcp.pop %v1105
    %v1109 = vmul.f32 1.0, %v1108
    %v1110 = vrcp.pop %v1106
    %v1111 = vmul.f32 1.0, %v1110
    %v1112 = vrcp.pop %v1107
    %v1113 = vmul.f32 1.0, %v1112
    %v1114 = vtanh.pop %v1095
    %v1115 = vmul.f32 %v1111, %v1001
    %v1116 = vmul.f32 %v1109, %v1114
    %v1117 = vadd.f32 %v1115, %v1116
    %v1118 = vtanh.pop %v1117
    %v1119 = vmul.f32 %v1113, %v1118
    %v1120 = vpack.c.bf16 %v1119, %v1119
    %1121 = vst [vmem:[%s4 + $0x20] sm:$0xff] %v1119
    %v1122 = vld [vmem:[#allocation2 + $0xa0] sm:$0xff]
    %v1123 = vld [vmem:[#allocation2 + $0xa8] sm:$0xff]
    %v1124 = vld [vmem:[#allocation2 + $0xb0] sm:$0xff]
    %v1125 = vld [vmem:[#allocation2 + $0xb8] sm:$0xff]
    %1126 = vmatprep.subr.bf16.mxu0 %v627
    %1127 = vmatpush1.bf16.msra.mxu0 %v626
    %1128 = vmatprep.subr.bf16.mxu0 %v623
    %1129 = vmatpush1.bf16.msra.mxu0 %v622
    %1130 = vmatprep.subr.bf16.mxu0 %v619
    %1131 = vmatpush1.bf16.msra.mxu0 %v618
    %1132 = vmatprep.subr.bf16.mxu0 %v615
    %1133 = vmatpush1.bf16.msra.mxu0 %v614
    %1134 = vmatprep.subr.bf16.mxu0 %v611
    %1135 = vmatpush1.bf16.msra.mxu0 %v610
    %1136 = vmatprep.subr.bf16.mxu0 %v607
    %1137 = vmatpush1.bf16.msra.mxu0 %v606
    %1138 = vmatprep.subr.bf16.mxu0 %v603
    %1139 = vmatpush1.bf16.msra.mxu0 %v602
    %1140 = vmatprep.subr.bf16.mxu0 %v599
    %1141 = vmatpush1.bf16.msra.mxu0 %v598
    %1142 = vmatprep.subr.bf16.mxu0 0
    %1143 = vmatpush2.bf16.msra.mxu0 0
    %1144 = vmatprep.subr.bf16.mxu0 0
    %1145 = vmatpush2.bf16.msra.mxu0 0
    %1146 = vmatprep.subr.bf16.mxu0 0
    %1147 = vmatpush2.bf16.msra.mxu0 0
    %1148 = vmatprep.subr.bf16.mxu0 0
    %1149 = vmatpush2.bf16.msra.mxu0 0
    %1150 = vmatprep.subr.bf16.mxu0 0
    %1151 = vmatpush2.bf16.msra.mxu0 0
    %1152 = vmatprep.subr.bf16.mxu0 0
    %1153 = vmatpush2.bf16.msra.mxu0 0
    %1154 = vmatprep.subr.bf16.mxu0 0
    %1155 = vmatpush2.bf16.msra.mxu0 0
    %1156 = vmatprep.subr.bf16.mxu0 0
    %1157 = vmatpush2.bf16.msra.mxu0 0
    %1158 = vmatprep.mubr.bf16.mxu0 0
    %1159 = vmatmul.mubr.bf16.gmra.mxu0 %v1120
    %v1160 = vpop.f32.mrf.mxu0
    %v1161 = vadd.f32 0.0, %v1160
    %v1162 = vpop.f32.mrf.mxu0
    %v1163 = vadd.f32 0.0, %v1162
    %v1164 = vpop.f32.mrf.mxu0
    %v1165 = vpop.f32.mrf.mxu0
    %1166 = vdwg.mxu0
    %1167 = vmatprep.subr.bf16.mxu0 %v629
    %1168 = vmatpush1.bf16.msra.mxu0 %v628
    %1169 = vmatprep.subr.bf16.mxu0 %v625
    %1170 = vmatpush1.bf16.msra.mxu0 %v624
    %1171 = vmatprep.subr.bf16.mxu0 %v621
    %1172 = vmatpush1.bf16.msra.mxu0 %v620
    %1173 = vmatprep.subr.bf16.mxu0 %v617
    %1174 = vmatpush1.bf16.msra.mxu0 %v616
    %1175 = vmatprep.subr.bf16.mxu0 %v613
    %1176 = vmatpush1.bf16.msra.mxu0 %v612
    %1177 = vmatprep.subr.bf16.mxu0 %v609
    %1178 = vmatpush1.bf16.msra.mxu0 %v608
    %1179 = vmatprep.subr.bf16.mxu0 %v605
    %1180 = vmatpush1.bf16.msra.mxu0 %v604
    %1181 = vmatprep.subr.bf16.mxu0 %v601
    %1182 = vmatpush1.bf16.msra.mxu0 %v600
    %1183 = vmatprep.subr.bf16.mxu0 0
    %1184 = vmatpush2.bf16.msra.mxu0 0
    %1185 = vmatprep.subr.bf16.mxu0 0
    %1186 = vmatpush2.bf16.msra.mxu0 0
    %1187 = vmatprep.subr.bf16.mxu0 0
    %1188 = vmatpush2.bf16.msra.mxu0 0
    %1189 = vmatprep.subr.bf16.mxu0 0
    %1190 = vmatpush2.bf16.msra.mxu0 0
    %1191 = vmatprep.subr.bf16.mxu0 0
    %1192 = vmatpush2.bf16.msra.mxu0 0
    %1193 = vmatprep.subr.bf16.mxu0 0
    %1194 = vmatpush2.bf16.msra.mxu0 0
    %1195 = vmatprep.subr.bf16.mxu0 0
    %1196 = vmatpush2.bf16.msra.mxu0 0
    %1197 = vmatprep.subr.bf16.mxu0 0
    %1198 = vmatpush2.bf16.msra.mxu0 0
    %1199 = vmatprep.mubr.bf16.mxu0 0
    %1200 = vmatmul.mubr.bf16.gmra.mxu0 %v1120
    %v1201 = vpop.f32.mrf.mxu0
    %v1202 = vadd.f32 0.0, %v1201
    %v1203 = vpop.f32.mrf.mxu0
    %v1204 = vadd.f32 0.0, %v1203
    %v1205 = vpop.f32.mrf.mxu0
    %v1206 = vpop.f32.mrf.mxu0
    %1207 = vdwg.mxu0
    %v1208 = vadd.f32 %v1122, %v1161
    %v1209 = vadd.f32 %v1123, %v1163
    %v1210 = vadd.f32 %v1124, %v1202
    %v1211 = vadd.f32 %v1125, %v1204
    %v1212 = vxor.u32 %v1208, 2147483648
    %v1213 = vxor.u32 %v1209, 2147483648
    %v1214 = vxor.u32 %v1210, 2147483648
    %v1215 = vmul.f32 %v1212, 1.442695
    %v1216 = vpow.pop %v1215
    %v1217 = vmul.f32 %v1213, 1.442695
    %v1218 = vpow.pop %v1217
    %v1219 = vmul.f32 %v1214, 1.442695
    %v1220 = vpow.pop %v1219
    %v1221 = vadd.f32 %v1216, 1.0
    %v1222 = vadd.f32 %v1218, 1.0
    %v1223 = vadd.f32 %v1220, 1.0
    %v1224 = vrcp.pop %v1221
    %v1225 = vmul.f32 1.0, %v1224
    %v1226 = vrcp.pop %v1222
    %v1227 = vmul.f32 1.0, %v1226
    %v1228 = vrcp.pop %v1223
    %v1229 = vmul.f32 1.0, %v1228
    %v1230 = vtanh.pop %v1211
    %v1231 = vmul.f32 %v1227, %v1117
    %v1232 = vmul.f32 %v1225, %v1230
    %v1233 = vadd.f32 %v1231, %v1232
    %v1234 = vtanh.pop %v1233
    %v1235 = vmul.f32 %v1229, %v1234
    %v1236 = vpack.c.bf16 %v1235, %v1235
    %1237 = vst [vmem:[%s4 + $0x28] sm:$0xff] %v1235
    %v1238 = vld [vmem:[#allocation2 + $0xc0] sm:$0xff]
    %v1239 = vld [vmem:[#allocation2 + $0xc8] sm:$0xff]
    %v1240 = vld [vmem:[#allocation2 + $0xd0] sm:$0xff]
    %v1241 = vld [vmem:[#allocation2 + $0xd8] sm:$0xff]
    %1242 = vmatprep.subr.bf16.mxu0 %v627
    %1243 = vmatpush1.bf16.msra.mxu0 %v626
    %1244 = vmatprep.subr.bf16.mxu0 %v623
    %1245 = vmatpush1.bf16.msra.mxu0 %v622
    %1246 = vmatprep.subr.bf16.mxu0 %v619
    %1247 = vmatpush1.bf16.msra.mxu0 %v618
    %1248 = vmatprep.subr.bf16.mxu0 %v615
    %1249 = vmatpush1.bf16.msra.mxu0 %v614
    %1250 = vmatprep.subr.bf16.mxu0 %v611
    %1251 = vmatpush1.bf16.msra.mxu0 %v610
    %1252 = vmatprep.subr.bf16.mxu0 %v607
    %1253 = vmatpush1.bf16.msra.mxu0 %v606
    %1254 = vmatprep.subr.bf16.mxu0 %v603
    %1255 = vmatpush1.bf16.msra.mxu0 %v602
    %1256 = vmatprep.subr.bf16.mxu0 %v599
    %1257 = vmatpush1.bf16.msra.mxu0 %v598
    %1258 = vmatprep.subr.bf16.mxu0 0
    %1259 = vmatpush2.bf16.msra.mxu0 0
    %1260 = vmatprep.subr.bf16.mxu0 0
    %1261 = vmatpush2.bf16.msra.mxu0 0
    %1262 = vmatprep.subr.bf16.mxu0 0
    %1263 = vmatpush2.bf16.msra.mxu0 0
    %1264 = vmatprep.subr.bf16.mxu0 0
    %1265 = vmatpush2.bf16.msra.mxu0 0
    %1266 = vmatprep.subr.bf16.mxu0 0
    %1267 = vmatpush2.bf16.msra.mxu0 0
    %1268 = vmatprep.subr.bf16.mxu0 0
    %1269 = vmatpush2.bf16.msra.mxu0 0
    %1270 = vmatprep.subr.bf16.mxu0 0
    %1271 = vmatpush2.bf16.msra.mxu0 0
    %1272 = vmatprep.subr.bf16.mxu0 0
    %1273 = vmatpush2.bf16.msra.mxu0 0
    %1274 = vmatprep.mubr.bf16.mxu0 0
    %1275 = vmatmul.mubr.bf16.gmra.mxu0 %v1236
    %v1276 = vpop.f32.mrf.mxu0
    %v1277 = vadd.f32 0.0, %v1276
    %v1278 = vpop.f32.mrf.mxu0
    %v1279 = vadd.f32 0.0, %v1278
    %v1280 = vpop.f32.mrf.mxu0
    %v1281 = vpop.f32.mrf.mxu0
    %1282 = vdwg.mxu0
    %1283 = vmatprep.subr.bf16.mxu0 %v629
    %1284 = vmatpush1.bf16.msra.mxu0 %v628
    %1285 = vmatprep.subr.bf16.mxu0 %v625
    %1286 = vmatpush1.bf16.msra.mxu0 %v624
    %1287 = vmatprep.subr.bf16.mxu0 %v621
    %1288 = vmatpush1.bf16.msra.mxu0 %v620
    %1289 = vmatprep.subr.bf16.mxu0 %v617
    %1290 = vmatpush1.bf16.msra.mxu0 %v616
    %1291 = vmatprep.subr.bf16.mxu0 %v613
    %1292 = vmatpush1.bf16.msra.mxu0 %v612
    %1293 = vmatprep.subr.bf16.mxu0 %v609
    %1294 = vmatpush1.bf16.msra.mxu0 %v608
    %1295 = vmatprep.subr.bf16.mxu0 %v605
    %1296 = vmatpush1.bf16.msra.mxu0 %v604
    %1297 = vmatprep.subr.bf16.mxu0 %v601
    %1298 = vmatpush1.bf16.msra.mxu0 %v600
    %1299 = vmatprep.subr.bf16.mxu0 0
    %1300 = vmatpush2.bf16.msra.mxu0 0
    %1301 = vmatprep.subr.bf16.mxu0 0
    %1302 = vmatpush2.bf16.msra.mxu0 0
    %1303 = vmatprep.subr.bf16.mxu0 0
    %1304 = vmatpush2.bf16.msra.mxu0 0
    %1305 = vmatprep.subr.bf16.mxu0 0
    %1306 = vmatpush2.bf16.msra.mxu0 0
    %1307 = vmatprep.subr.bf16.mxu0 0
    %1308 = vmatpush2.bf16.msra.mxu0 0
    %1309 = vmatprep.subr.bf16.mxu0 0
    %1310 = vmatpush2.bf16.msra.mxu0 0
    %1311 = vmatprep.subr.bf16.mxu0 0
    %1312 = vmatpush2.bf16.msra.mxu0 0
    %1313 = vmatprep.subr.bf16.mxu0 0
    %1314 = vmatpush2.bf16.msra.mxu0 0
    %1315 = vmatprep.mubr.bf16.mxu0 0
    %1316 = vmatmul.mubr.bf16.gmra.mxu0 %v1236
    %v1317 = vpop.f32.mrf.mxu0
    %v1318 = vadd.f32 0.0, %v1317
    %v1319 = vpop.f32.mrf.mxu0
    %v1320 = vadd.f32 0.0, %v1319
    %v1321 = vpop.f32.mrf.mxu0
    %v1322 = vpop.f32.mrf.mxu0
    %1323 = vdwg.mxu0
    %v1324 = vadd.f32 %v1238, %v1277
    %v1325 = vadd.f32 %v1239, %v1279
    %v1326 = vadd.f32 %v1240, %v1318
    %v1327 = vadd.f32 %v1241, %v1320
    %v1328 = vxor.u32 %v1324, 2147483648
    %v1329 = vxor.u32 %v1325, 2147483648
    %v1330 = vxor.u32 %v1326, 2147483648
    %v1331 = vmul.f32 %v1328, 1.442695
    %v1332 = vpow.pop %v1331
    %v1333 = vmul.f32 %v1329, 1.442695
    %v1334 = vpow.pop %v1333
    %v1335 = vmul.f32 %v1330, 1.442695
    %v1336 = vpow.pop %v1335
    %v1337 = vadd.f32 %v1332, 1.0
    %v1338 = vadd.f32 %v1334, 1.0
    %v1339 = vadd.f32 %v1336, 1.0
    %v1340 = vrcp.pop %v1337
    %v1341 = vmul.f32 1.0, %v1340
    %v1342 = vrcp.pop %v1338
    %v1343 = vmul.f32 1.0, %v1342
    %v1344 = vrcp.pop %v1339
    %v1345 = vmul.f32 1.0, %v1344
    %v1346 = vtanh.pop %v1327
    %v1347 = vmul.f32 %v1343, %v1233
    %v1348 = vmul.f32 %v1341, %v1346
    %v1349 = vadd.f32 %v1347, %v1348
    %v1350 = vtanh.pop %v1349
    %v1351 = vmul.f32 %v1345, %v1350
    %v1352 = vpack.c.bf16 %v1351, %v1351
    %1353 = vst [vmem:[%s4 + $0x30] sm:$0xff] %v1351
    %v1354 = vld [vmem:[#allocation2 + $0xe0] sm:$0xff]
    %v1355 = vld [vmem:[#allocation2 + $0xe8] sm:$0xff]
    %v1356 = vld [vmem:[#allocation2 + $0xf0] sm:$0xff]
    %v1357 = vld [vmem:[#allocation2 + $0xf8] sm:$0xff]
    %1358 = vmatprep.subr.bf16.mxu0 %v627
    %1359 = vmatpush1.bf16.msra.mxu0 %v626
    %1360 = vmatprep.subr.bf16.mxu0 %v623
    %1361 = vmatpush1.bf16.msra.mxu0 %v622
    %1362 = vmatprep.subr.bf16.mxu0 %v619
    %1363 = vmatpush1.bf16.msra.mxu0 %v618
    %1364 = vmatprep.subr.bf16.mxu0 %v615
    %1365 = vmatpush1.bf16.msra.mxu0 %v614
    %1366 = vmatprep.subr.bf16.mxu0 %v611
    %1367 = vmatpush1.bf16.msra.mxu0 %v610
    %1368 = vmatprep.subr.bf16.mxu0 %v607
    %1369 = vmatpush1.bf16.msra.mxu0 %v606
    %1370 = vmatprep.subr.bf16.mxu0 %v603
    %1371 = vmatpush1.bf16.msra.mxu0 %v602
    %1372 = vmatprep.subr.bf16.mxu0 %v599
    %1373 = vmatpush1.bf16.msra.mxu0 %v598
    %1374 = vmatprep.subr.bf16.mxu0 0
    %1375 = vmatpush2.bf16.msra.mxu0 0
    %1376 = vmatprep.subr.bf16.mxu0 0
    %1377 = vmatpush2.bf16.msra.mxu0 0
    %1378 = vmatprep.subr.bf16.mxu0 0
    %1379 = vmatpush2.bf16.msra.mxu0 0
    %1380 = vmatprep.subr.bf16.mxu0 0
    %1381 = vmatpush2.bf16.msra.mxu0 0
    %1382 = vmatprep.subr.bf16.mxu0 0
    %1383 = vmatpush2.bf16.msra.mxu0 0
    %1384 = vmatprep.subr.bf16.mxu0 0
    %1385 = vmatpush2.bf16.msra.mxu0 0
    %1386 = vmatprep.subr.bf16.mxu0 0
    %1387 = vmatpush2.bf16.msra.mxu0 0
    %1388 = vmatprep.subr.bf16.mxu0 0
    %1389 = vmatpush2.bf16.msra.mxu0 0
    %1390 = vmatprep.mubr.bf16.mxu0 0
    %1391 = vmatmul.mubr.bf16.gmra.mxu0 %v1352
    %v1392 = vpop.f32.mrf.mxu0
    %v1393 = vadd.f32 0.0, %v1392
    %v1394 = vpop.f32.mrf.mxu0
    %v1395 = vadd.f32 0.0, %v1394
    %v1396 = vpop.f32.mrf.mxu0
    %v1397 = vpop.f32.mrf.mxu0
    %1398 = vdwg.mxu0
    %1399 = vmatprep.subr.bf16.mxu0 %v629
    %1400 = vmatpush1.bf16.msra.mxu0 %v628
    %1401 = vmatprep.subr.bf16.mxu0 %v625
    %1402 = vmatpush1.bf16.msra.mxu0 %v624
    %1403 = vmatprep.subr.bf16.mxu0 %v621
    %1404 = vmatpush1.bf16.msra.mxu0 %v620
    %1405 = vmatprep.subr.bf16.mxu0 %v617
    %1406 = vmatpush1.bf16.msra.mxu0 %v616
    %1407 = vmatprep.subr.bf16.mxu0 %v613
    %1408 = vmatpush1.bf16.msra.mxu0 %v612
    %1409 = vmatprep.subr.bf16.mxu0 %v609
    %1410 = vmatpush1.bf16.msra.mxu0 %v608
    %1411 = vmatprep.subr.bf16.mxu0 %v605
    %1412 = vmatpush1.bf16.msra.mxu0 %v604
    %1413 = vmatprep.subr.bf16.mxu0 %v601
    %1414 = vmatpush1.bf16.msra.mxu0 %v600
    %1415 = vmatprep.subr.bf16.mxu0 0
    %1416 = vmatpush2.bf16.msra.mxu0 0
    %1417 = vmatprep.subr.bf16.mxu0 0
    %1418 = vmatpush2.bf16.msra.mxu0 0
    %1419 = vmatprep.subr.bf16.mxu0 0
    %1420 = vmatpush2.bf16.msra.mxu0 0
    %1421 = vmatprep.subr.bf16.mxu0 0
    %1422 = vmatpush2.bf16.msra.mxu0 0
    %1423 = vmatprep.subr.bf16.mxu0 0
    %1424 = vmatpush2.bf16.msra.mxu0 0
    %1425 = vmatprep.subr.bf16.mxu0 0
    %1426 = vmatpush2.bf16.msra.mxu0 0
    %1427 = vmatprep.subr.bf16.mxu0 0
    %1428 = vmatpush2.bf16.msra.mxu0 0
    %1429 = vmatprep.subr.bf16.mxu0 0
    %1430 = vmatpush2.bf16.msra.mxu0 0
    %1431 = vmatprep.mubr.bf16.mxu0 0
    %1432 = vmatmul.mubr.bf16.gmra.mxu0 %v1352
    %v1433 = vpop.f32.mrf.mxu0
    %v1434 = vadd.f32 0.0, %v1433
    %v1435 = vpop.f32.mrf.mxu0
    %v1436 = vadd.f32 0.0, %v1435
    %v1437 = vpop.f32.mrf.mxu0
    %v1438 = vpop.f32.mrf.mxu0
    %1439 = vdwg.mxu0
    %v1440 = vadd.f32 %v1354, %v1393
    %v1441 = vadd.f32 %v1355, %v1395
    %v1442 = vadd.f32 %v1356, %v1434
    %v1443 = vadd.f32 %v1357, %v1436
    %v1444 = vxor.u32 %v1440, 2147483648
    %v1445 = vxor.u32 %v1441, 2147483648
    %v1446 = vxor.u32 %v1442, 2147483648
    %v1447 = vmul.f32 %v1444, 1.442695
    %v1448 = vpow.pop %v1447
    %v1449 = vmul.f32 %v1445, 1.442695
    %v1450 = vpow.pop %v1449
    %v1451 = vmul.f32 %v1446, 1.442695
    %v1452 = vpow.pop %v1451
    %v1453 = vadd.f32 %v1448, 1.0
    %v1454 = vadd.f32 %v1450, 1.0
    %v1455 = vadd.f32 %v1452, 1.0
    %v1456 = vrcp.pop %v1453
    %v1457 = vmul.f32 1.0, %v1456
    %v1458 = vrcp.pop %v1454
    %v1459 = vmul.f32 1.0, %v1458
    %v1460 = vrcp.pop %v1455
    %v1461 = vmul.f32 1.0, %v1460
    %v1462 = vtanh.pop %v1443
    %v1463 = vmul.f32 %v1459, %v1349
    %v1464 = vmul.f32 %v1457, %v1462
    %v1465 = vadd.f32 %v1463, %v1464
    %v1466 = vtanh.pop %v1465
    %v1467 = vmul.f32 %v1461, %v1466
    %1468 = vst [vmem:[%s4 + $0x38] sm:$0xff] %v1467
    // Predicated region
    $region22: #{decoder_forward.2} parent=1 // pred_check
      _
    $region23: #{decoder_forward.2} parent=1 // pred_check_branch
      %1470 = sbr.rel (0) target = $region25
    $region24: #{decoder_forward.2} parent=1 // pred_region
      _
    $region25: #{decoder_forward.2} parent=1 // pred_fallthru
      _
    // Predicated region
    $region26: #{decoder_forward.2} parent=1 // pred_check
      _
    $region27: #{decoder_forward.2} parent=1 // pred_check_branch
      %1472 = sbr.rel (0) target = $region29
    $region28: #{decoder_forward.2} parent=1 // pred_region
      _
    $region29: #{decoder_forward.2} parent=1 // pred_fallthru
      _
    %1473 = vsyncpa [#allocation4], 1

</llo_original>
